<compile_context>
chip_gen: v5e
topology: v5e:2x2
jax: 0.10.0
libtpu: 0.0.40
codegen_flags: <defaults>
</compile_context>

<pallas_src>
import functools

import jax
import jax.numpy as jnp
from jax import lax
from jax.experimental import pallas as pl
from jax.experimental.pallas import tpu as pltpu

NEG_SLOPE = 0.01  # nn.LeakyReLU default negative_slope


def _leaky(x):
    return jnp.where(x > 0, x, NEG_SLOPE * x)


def _round_up(v, m):
    return ((v + m - 1) // m) * m


def _causal_taps_dot(x, w_ref, n_out, off0, dilation, num_taps):
    """K accumulating per-tap MXU dots (bf16 in, f32 acc).

    x     : (Bt, W, C) bf16 value
    w_ref : (K, C, C_out) bf16 ref
    returns (Bt * n_out, C_out) f32
    """
    bt, _, c = x.shape
    acc = None
    for j in range(num_taps):
        o = off0 + j * dilation
        xj = x[:, o:o + n_out, :].reshape(bt * n_out, c)
        d = jnp.dot(xj, w_ref[j], preferred_element_type=jnp.float32)
        acc = d if acc is None else acc + d
    return acc


def temporal_block_kernel(xwin_ref, w1_ref, b1_ref, w2_ref, b2_ref, wd_ref, bd_ref,
                          out_ref, *, dilation, pad, halo):
    """One (batch-tile, L-tile) grid step.

    xwin_ref : (Bt, W, C_in)     bf16, W = TL + 2*halo  (overlapping causal window)
    w1_ref   : (K, C_in, C_out)  bf16  conv1 taps
    w2_ref   : (K, C_out, C_out) bf16  conv2 taps
    wd_ref   : (C_in, C_out)     bf16  1x1 downsample (identity matrix if no downsample)
    b*_ref   : (1, C_out)        f32
    out_ref  : (Bt, C_out, TL)   NCW output tile, lane-dense over TL
    """
    Bt, c_out, TL = out_ref.shape
    c_in = xwin_ref.shape[-1]
    K = w1_ref.shape[0]
    P, P1 = pad, halo                      # logical causal pad / sublane-aligned halo
    off0 = P1 - P                          # first tap offset inside the window
    n1 = TL + P1                           # conv1 rows computed (tile + conv2 halo)

    xwin = xwin_ref[...]                   # (Bt, W, C_in) bf16

    # ---- conv1 + chomp + LeakyReLU (+dropout=id): K accumulating MXU dots ------------------
    acc1 = _causal_taps_dot(xwin, w1_ref, n1, off0, dilation, K)
    h1 = _leaky(acc1 + b1_ref[...]).reshape(Bt, n1, c_out)
    # Zero the halo rows whose global time is < 0: PyTorch zero-pads conv2's input, whereas a
    # naive recompute would give leaky(b1) there.  (Global time of h1 row i is l*TL + i - P1.)
    row = lax.broadcasted_iota(jnp.int32, (Bt, n1, c_out), 1)
    h1 = jnp.where(row + pl.program_id(1) * TL >= P1, h1, 0.0).astype(jnp.bfloat16)

    # ---- conv2 + chomp + LeakyReLU (+dropout=id) --------------------------------------------
    acc2 = _causal_taps_dot(h1, w2_ref, TL, off0, dilation, K)
    out2 = _leaky(acc2 + b2_ref[...])      # (Bt*TL, C_out) f32

    # ---- residual branch: 1x1 conv on the unshifted tile slice of x -------------------------
    xres = xwin[:, 2 * P1:2 * P1 + TL, :].reshape(Bt * TL, c_in)
    res = jnp.dot(xres, wd_ref[...], preferred_element_type=jnp.float32) + bd_ref[...]

    y = _leaky(out2 + res)                 # (Bt*TL, C_out) f32

    # ---- single fused transpose + lane-dense NCW stores (TL multiple of 128) ----------------
    yT = y.astype(out_ref.dtype).T         # (C_out, Bt*TL)
    for bt in range(Bt):
        out_ref[bt] = yT[:, bt * TL:(bt + 1) * TL]


def temporal_block(x, params, *, kernel_size, dilation, batch_block=4, time_block=256,
                   out_dtype=jnp.float32):
    """x: (B, C_in, L) PyTorch NCW layout. Returns (B, C_out, L) `out_dtype`.

    out_dtype=jnp.bfloat16 halves HBM writeback (useful on v5e) if the consumer tolerates it.
    """
    w1, b1, w2, b2, wd, bd = params
    B, c_in, L = x.shape
    K = kernel_size
    c_out = w1.shape[0]
    P = (K - 1) * dilation                 # logical causal pad ("chomp" size)
    P1 = _round_up(P, 8)                   # sublane-aligned per-conv halo

    # L tiling: TL multiple of 128 (lane-dense NCW stores); right-pad L to a tile multiple.
    TL = _round_up(min(max(time_block, 1), max(L, 1)), 128)
    Lp = _round_up(L, TL)
    n_t = Lp // TL
    W = TL + 2 * P1                        # per-tile window = conv1 + conv2 receptive field

    # Batch tiling; keep >= 2 grid steps so both v7x TensorCores get work.
    Bt = max(1, min(batch_block, B))
    if pl.cdiv(B, Bt) * n_t < 2 and B >= 2:
        Bt = max(1, B // 2)
    Bp = _round_up(B, Bt)

    # ---- fold parameters (bf16 weights, f32 biases) -----------------------------------------
    w1_t = jnp.transpose(w1, (2, 1, 0)).astype(jnp.bfloat16)      # (K, C_in, C_out)
    w2_t = jnp.transpose(w2, (2, 1, 0)).astype(jnp.bfloat16)      # (K, C_out, C_out)
    if wd is None:                          # n_inputs == n_outputs -> identity residual
        wd_t = jnp.eye(c_in, dtype=jnp.bfloat16)
        bd_v = jnp.zeros((c_out,), jnp.float32)
    else:
        wd_t = jnp.transpose(wd[:, :, 0], (1, 0)).astype(jnp.bfloat16)   # (C_in, C_out)
        bd_v = bd
    b1_t = b1.reshape(1, -1).astype(jnp.float32)
    b2_t = b2.reshape(1, -1).astype(jnp.float32)
    bd_t = bd_v.reshape(1, -1).astype(jnp.float32)

    # ---- build overlapping causal windows (time-major, channels-last, bf16) -----------------
    xt = jnp.transpose(x, (0, 2, 1)).astype(jnp.bfloat16)         # (B, L, C_in)
    if Bp != B:
        xt = jnp.pad(xt, ((0, Bp - B), (0, 0), (0, 0)))
    xg = jnp.pad(xt, ((0, 0), (2 * P1, Lp - L), (0, 0)))          # causal left pad + right pad
    if n_t == 1:
        xwin = xg[:, None]                                        # (Bp, 1, W, C_in)
    else:
        xwin = jnp.stack([xg[:, t * TL:t * TL + W, :] for t in range(n_t)], axis=1)

    flops = 2 * Bp * n_t * ((TL + P1) * K * c_in * c_out
                            + TL * K * c_out * c_out + TL * c_in * c_out)
    bytes_accessed = (Bp * n_t * W * c_in * 2
                      + (w1_t.size + w2_t.size + wd_t.size) * 2 + 3 * c_out * 4
                      + Bp * c_out * Lp * jnp.dtype(out_dtype).itemsize)

    kernel = functools.partial(temporal_block_kernel, dilation=dilation, pad=P, halo=P1)
    out = pl.pallas_call(
        kernel,
        out_shape=jax.ShapeDtypeStruct((Bp, c_out, Lp), out_dtype),
        grid_spec=pltpu.PrefetchScalarGridSpec(
            num_scalar_prefetch=0,
            grid=(Bp // Bt, n_t),
            in_specs=[
                pl.BlockSpec((Bt, None, W, c_in), lambda b, l: (b, l, 0, 0)),
                pl.BlockSpec((K, c_in, c_out), lambda b, l: (0, 0, 0)),
                pl.BlockSpec((1, c_out), lambda b, l: (0, 0)),
                pl.BlockSpec((K, c_out, c_out), lambda b, l: (0, 0, 0)),
                pl.BlockSpec((1, c_out), lambda b, l: (0, 0)),
                pl.BlockSpec((c_in, c_out), lambda b, l: (0, 0)),
                pl.BlockSpec((1, c_out), lambda b, l: (0, 0)),
            ],
            out_specs=pl.BlockSpec((Bt, c_out, TL), lambda b, l: (b, 0, l)),
        ),
        compiler_params=pltpu.CompilerParams(
            dimension_semantics=("parallel", "parallel"),
            vmem_limit_bytes=40 * 1024 * 1024),     # sized for v7x's 64 MiB VMEM
        cost_estimate=pl.CostEstimate(flops=flops, transcendentals=0,
                                      bytes_accessed=bytes_accessed),
    )(xwin, w1_t, b1_t, w2_t, b2_t, wd_t, bd_t)

    return out[:B, :, :L]                   # already (B, C_out, L) NCW


# ---------------- parameter init (deterministic, mirrors the module's shapes) ----------------
def init_params(key, c_in, c_out, K):
    ks = jax.random.split(key, 6)

    def weight_norm_weight(k, shape):
        # weight_norm: W = g * v / ||v|| with g initialized to ||v||  =>  W == v here.
        v = 0.01 * jax.random.normal(k, shape, jnp.float32)       # .normal_(0, 0.01)
        g = jnp.sqrt(jnp.sum(v * v, axis=(1, 2), keepdims=True))
        return g * v / jnp.sqrt(jnp.sum(v * v, axis=(1, 2), keepdims=True))

    w1 = weight_norm_weight(ks[0], (c_out, c_in, K))
    w2 = weight_norm_weight(ks[1], (c_out, c_out, K))
    wd = 0.01 * jax.random.normal(ks[2], (c_out, c_in, 1), jnp.float32)
    b1 = 0.05 * jax.random.normal(ks[3], (c_out,), jnp.float32)
    b2 = 0.05 * jax.random.normal(ks[4], (c_out,), jnp.float32)
    bd = 0.05 * jax.random.normal(ks[5], (c_out,), jnp.float32)
    return (w1, b1, w2, b2, wd, bd)


# ---------------- pure-JAX reference (mirrors the PyTorch forward + kernel dtype policy) ------
def ref_forward(x, params, *, kernel_size, dilation, padding):
    w1, b1, w2, b2, wd, bd = params
    L = x.shape[2]
    cast = lambda a: a.astype(jnp.bfloat16).astype(jnp.float32)   # mirror kernel bf16 inputs
    x32, w1c, w2c, wdc = cast(x), cast(w1), cast(w2), cast(wd)

    def conv1d(v, w, b, pad, dil):
        y = lax.conv_general_dilated(
            v, w, window_strides=(1,), padding=[(pad, pad)],
            rhs_dilation=(dil,), dimension_numbers=('NCH', 'OIH', 'NCH'),
            preferred_element_type=jnp.float32)
        return y + b[None, :, None]

    h = conv1d(x32, w1c, b1, padding, dilation)[:, :, :L]   # conv1 + chomp1
    h = _leaky(h)                                           # relu1 (+dropout eval)
    h = cast(h)                                             # kernel feeds bf16 h1 into conv2
    h = conv1d(h, w2c, b2, padding, dilation)[:, :, :L]     # conv2 + chomp2
    h = _leaky(h)                                           # relu2 (+dropout eval)
    res = conv1d(x32, wdc, bd, 0, 1)                        # downsample 1x1 conv
    return _leaky(h + res)


if __name__ == "__main__":
    key = jax.random.PRNGKey(0)
    k1, k2, k3, k4 = jax.random.split(key, 4)

    # ---- case 1: toy shapes (single L tile; batch split across two parallel grid steps) ----
    B, C_IN, C_OUT, L = 2, 4, 8, 16
    K, DILATION = 3, 2
    PADDING = (K - 1) * DILATION
    x = jax.random.normal(k1, (B, C_IN, L), jnp.float32)          # PyTorch NCW input
    params = init_params(k2, C_IN, C_OUT, K)

    out = jax.block_until_ready(temporal_block(x, params, kernel_size=K, dilation=DILATION))
    expected = ref_forward(x, params, kernel_size=K, dilation=DILATION, padding=PADDING)
    assert out.shape == (B, C_OUT, L), out.shape
    assert jnp.allclose(out, expected, atol=5e-4, rtol=5e-4), \
        float(jnp.max(jnp.abs(out - expected)))

    # ---- case 2: exercises L tiling with causal halo, right pad, and batch padding ---------
    B2, C_IN2, C_OUT2, L2 = 3, 6, 8, 300
    K2, DIL2 = 3, 4
    PAD2 = (K2 - 1) * DIL2
    x2 = jax.random.normal(k3, (B2, C_IN2, L2), jnp.float32)
    params2 = init_params(k4, C_IN2, C_OUT2, K2)

    out2 = jax.block_until_ready(temporal_block(x2, params2, kernel_size=K2, dilation=DIL2,
                                                batch_block=2, time_block=128))
    expected2 = ref_forward(x2, params2, kernel_size=K2, dilation=DIL2, padding=PAD2)
    assert out2.shape == (B2, C_OUT2, L2), out2.shape
    assert jnp.allclose(out2, expected2, atol=5e-4, rtol=5e-4), \
        float(jnp.max(jnp.abs(out2 - expected2)))

    print("KERNEL_OK")
</pallas_src>

<mosaic_0001>
module attributes {stable_mosaic.version = 11 : i64} {
  func.func @temporal_block_kernel(%arg0: i32, %arg1: i32, %arg2: memref<1x1x144x4xbf16, #tpu.memory_space<vmem>>, %arg3: memref<3x4x8xbf16, #tpu.memory_space<vmem>>, %arg4: memref<1x8xf32, #tpu.memory_space<vmem>>, %arg5: memref<3x8x8xbf16, #tpu.memory_space<vmem>>, %arg6: memref<1x8xf32, #tpu.memory_space<vmem>>, %arg7: memref<4x8xbf16, #tpu.memory_space<vmem>>, %arg8: memref<1x8xf32, #tpu.memory_space<vmem>>, %arg9: memref<1x8x128xf32, #tpu.memory_space<vmem>>) attributes {dimension_semantics = [#tpu.dimension_semantics<parallel>, #tpu.dimension_semantics<parallel>], iteration_bounds = array<i64: 2, 1>, scalar_prefetch = 0 : i64, scratch_operands = 0 : i64, tpu.core_type = #tpu.core_type<tc>, window_params = [{transform_indices = @transform_0, window_bounds = array<i64: 1, 1, 144, 4>}, {pipeline_mode = #tpu.pipeline_mode<synchronous>, transform_indices = @transform_1, window_bounds = array<i64: 3, 4, 8>}, {pipeline_mode = #tpu.pipeline_mode<synchronous>, transform_indices = @transform_2, window_bounds = array<i64: 1, 8>}, {pipeline_mode = #tpu.pipeline_mode<synchronous>, transform_indices = @transform_3, window_bounds = array<i64: 3, 8, 8>}, {pipeline_mode = #tpu.pipeline_mode<synchronous>, transform_indices = @transform_4, window_bounds = array<i64: 1, 8>}, {pipeline_mode = #tpu.pipeline_mode<synchronous>, transform_indices = @transform_5, window_bounds = array<i64: 4, 8>}, {pipeline_mode = #tpu.pipeline_mode<synchronous>, transform_indices = @transform_6, window_bounds = array<i64: 1, 8>}, {transform_indices = @transform_7, window_bounds = array<i64: 1, 8, 128>}]} {
    %c0 = arith.constant 0 : index
    %c0_0 = arith.constant 0 : index
    %c0_1 = arith.constant 0 : index
    %c0_2 = arith.constant 0 : index
    %0 = vector.load %arg2[%c0, %c0_0, %c0_1, %c0_2] : memref<1x1x144x4xbf16, #tpu.memory_space<vmem>>, vector<1x1x144x4xbf16>
    %1 = vector.shape_cast %0 : vector<1x1x144x4xbf16> to vector<1x144x4xbf16>
    %2 = vector.extract_strided_slice %1 {offsets = [0, 4, 0], sizes = [1, 136, 4], strides = [1, 1, 1]} : vector<1x144x4xbf16> to vector<1x136x4xbf16>
    %3 = vector.shape_cast %2 : vector<1x136x4xbf16> to vector<136x4xbf16>
    %c0_3 = arith.constant 0 : index
    %c0_4 = arith.constant 0 : index
    %c0_5 = arith.constant 0 : index
    %4 = vector.load %arg3[%c0_3, %c0_4, %c0_5] : memref<3x4x8xbf16, #tpu.memory_space<vmem>>, vector<1x4x8xbf16>
    %5 = vector.shape_cast %4 : vector<1x4x8xbf16> to vector<4x8xbf16>
    %cst = arith.constant dense<0.000000e+00> : vector<136x8xf32>
    %6 = tpu.matmul %3, %5, %cst {dimension_numbers = #tpu.dot_dimension_numbers<[1], [0], [0], [1], [0, 0, 1, 1], [], []>} : vector<136x4xbf16>, vector<4x8xbf16>, vector<136x8xf32> -> vector<136x8xf32>
    %7 = vector.extract_strided_slice %1 {offsets = [0, 6, 0], sizes = [1, 136, 4], strides = [1, 1, 1]} : vector<1x144x4xbf16> to vector<1x136x4xbf16>
    %8 = vector.shape_cast %7 : vector<1x136x4xbf16> to vector<136x4xbf16>
    %c1 = arith.constant 1 : index
    %c0_6 = arith.constant 0 : index
    %c0_7 = arith.constant 0 : index
    %9 = vector.load %arg3[%c1, %c0_6, %c0_7] : memref<3x4x8xbf16, #tpu.memory_space<vmem>>, vector<1x4x8xbf16>
    %10 = vector.shape_cast %9 : vector<1x4x8xbf16> to vector<4x8xbf16>
    %cst_8 = arith.constant dense<0.000000e+00> : vector<136x8xf32>
    %11 = tpu.matmul %8, %10, %cst_8 {dimension_numbers = #tpu.dot_dimension_numbers<[1], [0], [0], [1], [0, 0, 1, 1], [], []>} : vector<136x4xbf16>, vector<4x8xbf16>, vector<136x8xf32> -> vector<136x8xf32>
    %12 = arith.addf %6, %11 : vector<136x8xf32>
    %13 = vector.extract_strided_slice %1 {offsets = [0, 8, 0], sizes = [1, 136, 4], strides = [1, 1, 1]} : vector<1x144x4xbf16> to vector<1x136x4xbf16>
    %14 = vector.shape_cast %13 : vector<1x136x4xbf16> to vector<136x4xbf16>
    %c2 = arith.constant 2 : index
    %c0_9 = arith.constant 0 : index
    %c0_10 = arith.constant 0 : index
    %15 = vector.load %arg3[%c2, %c0_9, %c0_10] : memref<3x4x8xbf16, #tpu.memory_space<vmem>>, vector<1x4x8xbf16>
    %16 = vector.shape_cast %15 : vector<1x4x8xbf16> to vector<4x8xbf16>
    %cst_11 = arith.constant dense<0.000000e+00> : vector<136x8xf32>
    %17 = tpu.matmul %14, %16, %cst_11 {dimension_numbers = #tpu.dot_dimension_numbers<[1], [0], [0], [1], [0, 0, 1, 1], [], []>} : vector<136x4xbf16>, vector<4x8xbf16>, vector<136x8xf32> -> vector<136x8xf32>
    %18 = arith.addf %12, %17 : vector<136x8xf32>
    %c0_12 = arith.constant 0 : index
    %c0_13 = arith.constant 0 : index
    %19 = vector.load %arg4[%c0_12, %c0_13] : memref<1x8xf32, #tpu.memory_space<vmem>>, vector<1x8xf32>
    %20 = vector.broadcast %19 : vector<1x8xf32> to vector<136x8xf32>
    %21 = arith.addf %18, %20 : vector<136x8xf32>
    %cst_14 = arith.constant 0.000000e+00 : f32
    %22 = vector.broadcast %cst_14 : f32 to vector<136x8xf32>
    %23 = arith.cmpf ogt, %21, %22 : vector<136x8xf32>
    %cst_15 = arith.constant 0.00999999977 : f32
    %24 = vector.broadcast %cst_15 : f32 to vector<136x8xf32>
    %25 = arith.mulf %24, %21 : vector<136x8xf32>
    %26 = arith.select %23, %21, %25 : vector<136x8xi1>, vector<136x8xf32>
    %27 = vector.shape_cast %26 : vector<136x8xf32> to vector<1x136x8xf32>
    %28 = tpu.iota {dimensions = array<i32: 1>} : vector<1x136x8xi32>
    %c128_i32 = arith.constant 128 : i32
    %29 = arith.muli %arg1, %c128_i32 : i32
    %30 = vector.broadcast %29 : i32 to vector<1x136x8xi32>
    %31 = arith.addi %28, %30 : vector<1x136x8xi32>
    %c8_i32 = arith.constant 8 : i32
    %32 = vector.broadcast %c8_i32 : i32 to vector<1x136x8xi32>
    %33 = arith.cmpi sge, %31, %32 : vector<1x136x8xi32>
    %cst_16 = arith.constant 0.000000e+00 : f32
    %34 = vector.broadcast %cst_16 : f32 to vector<1x136x8xf32>
    %35 = arith.select %33, %27, %34 : vector<1x136x8xi1>, vector<1x136x8xf32>
    %36 = arith.truncf %35 : vector<1x136x8xf32> to vector<1x136x8xbf16>
    %37 = vector.extract_strided_slice %36 {offsets = [0, 4, 0], sizes = [1, 128, 8], strides = [1, 1, 1]} : vector<1x136x8xbf16> to vector<1x128x8xbf16>
    %38 = vector.shape_cast %37 : vector<1x128x8xbf16> to vector<128x8xbf16>
    %c0_17 = arith.constant 0 : index
    %c0_18 = arith.constant 0 : index
    %c0_19 = arith.constant 0 : index
    %39 = vector.load %arg5[%c0_17, %c0_18, %c0_19] : memref<3x8x8xbf16, #tpu.memory_space<vmem>>, vector<1x8x8xbf16>
    %40 = vector.shape_cast %39 : vector<1x8x8xbf16> to vector<8x8xbf16>
    %cst_20 = arith.constant dense<0.000000e+00> : vector<128x8xf32>
    %41 = tpu.matmul %38, %40, %cst_20 {dimension_numbers = #tpu.dot_dimension_numbers<[1], [0], [0], [1], [0, 0, 1, 1], [], []>} : vector<128x8xbf16>, vector<8x8xbf16>, vector<128x8xf32> -> vector<128x8xf32>
    %42 = vector.extract_strided_slice %36 {offsets = [0, 6, 0], sizes = [1, 128, 8], strides = [1, 1, 1]} : vector<1x136x8xbf16> to vector<1x128x8xbf16>
    %43 = vector.shape_cast %42 : vector<1x128x8xbf16> to vector<128x8xbf16>
    %c1_21 = arith.constant 1 : index
    %c0_22 = arith.constant 0 : index
    %c0_23 = arith.constant 0 : index
    %44 = vector.load %arg5[%c1_21, %c0_22, %c0_23] : memref<3x8x8xbf16, #tpu.memory_space<vmem>>, vector<1x8x8xbf16>
    %45 = vector.shape_cast %44 : vector<1x8x8xbf16> to vector<8x8xbf16>
    %cst_24 = arith.constant dense<0.000000e+00> : vector<128x8xf32>
    %46 = tpu.matmul %43, %45, %cst_24 {dimension_numbers = #tpu.dot_dimension_numbers<[1], [0], [0], [1], [0, 0, 1, 1], [], []>} : vector<128x8xbf16>, vector<8x8xbf16>, vector<128x8xf32> -> vector<128x8xf32>
    %47 = arith.addf %41, %46 : vector<128x8xf32>
    %48 = vector.extract_strided_slice %36 {offsets = [0, 8, 0], sizes = [1, 128, 8], strides = [1, 1, 1]} : vector<1x136x8xbf16> to vector<1x128x8xbf16>
    %49 = vector.shape_cast %48 : vector<1x128x8xbf16> to vector<128x8xbf16>
    %c2_25 = arith.constant 2 : index
    %c0_26 = arith.constant 0 : index
    %c0_27 = arith.constant 0 : index
    %50 = vector.load %arg5[%c2_25, %c0_26, %c0_27] : memref<3x8x8xbf16, #tpu.memory_space<vmem>>, vector<1x8x8xbf16>
    %51 = vector.shape_cast %50 : vector<1x8x8xbf16> to vector<8x8xbf16>
    %cst_28 = arith.constant dense<0.000000e+00> : vector<128x8xf32>
    %52 = tpu.matmul %49, %51, %cst_28 {dimension_numbers = #tpu.dot_dimension_numbers<[1], [0], [0], [1], [0, 0, 1, 1], [], []>} : vector<128x8xbf16>, vector<8x8xbf16>, vector<128x8xf32> -> vector<128x8xf32>
    %53 = arith.addf %47, %52 : vector<128x8xf32>
    %c0_29 = arith.constant 0 : index
    %c0_30 = arith.constant 0 : index
    %54 = vector.load %arg6[%c0_29, %c0_30] : memref<1x8xf32, #tpu.memory_space<vmem>>, vector<1x8xf32>
    %55 = vector.broadcast %54 : vector<1x8xf32> to vector<128x8xf32>
    %56 = arith.addf %53, %55 : vector<128x8xf32>
    %cst_31 = arith.constant 0.000000e+00 : f32
    %57 = vector.broadcast %cst_31 : f32 to vector<128x8xf32>
    %58 = arith.cmpf ogt, %56, %57 : vector<128x8xf32>
    %cst_32 = arith.constant 0.00999999977 : f32
    %59 = vector.broadcast %cst_32 : f32 to vector<128x8xf32>
    %60 = arith.mulf %59, %56 : vector<128x8xf32>
    %61 = arith.select %58, %56, %60 : vector<128x8xi1>, vector<128x8xf32>
    %62 = vector.extract_strided_slice %1 {offsets = [0, 16, 0], sizes = [1, 128, 4], strides = [1, 1, 1]} : vector<1x144x4xbf16> to vector<1x128x4xbf16>
    %63 = vector.shape_cast %62 : vector<1x128x4xbf16> to vector<128x4xbf16>
    %c0_33 = arith.constant 0 : index
    %c0_34 = arith.constant 0 : index
    %64 = vector.load %arg7[%c0_33, %c0_34] : memref<4x8xbf16, #tpu.memory_space<vmem>>, vector<4x8xbf16>
    %cst_35 = arith.constant dense<0.000000e+00> : vector<128x8xf32>
    %65 = tpu.matmul %63, %64, %cst_35 {dimension_numbers = #tpu.dot_dimension_numbers<[1], [0], [0], [1], [0, 0, 1, 1], [], []>} : vector<128x4xbf16>, vector<4x8xbf16>, vector<128x8xf32> -> vector<128x8xf32>
    %c0_36 = arith.constant 0 : index
    %c0_37 = arith.constant 0 : index
    %66 = vector.load %arg8[%c0_36, %c0_37] : memref<1x8xf32, #tpu.memory_space<vmem>>, vector<1x8xf32>
    %67 = vector.broadcast %66 : vector<1x8xf32> to vector<128x8xf32>
    %68 = arith.addf %65, %67 : vector<128x8xf32>
    %69 = arith.addf %61, %68 : vector<128x8xf32>
    %cst_38 = arith.constant 0.000000e+00 : f32
    %70 = vector.broadcast %cst_38 : f32 to vector<128x8xf32>
    %71 = arith.cmpf ogt, %69, %70 : vector<128x8xf32>
    %cst_39 = arith.constant 0.00999999977 : f32
    %72 = vector.broadcast %cst_39 : f32 to vector<128x8xf32>
    %73 = arith.mulf %72, %69 : vector<128x8xf32>
    %74 = arith.select %71, %69, %73 : vector<128x8xi1>, vector<128x8xf32>
    %75 = tpu.transpose %74, [1, 0] : vector<128x8xf32> -> vector<8x128xf32>
    %c0_40 = arith.constant 0 : index
    %c0_41 = arith.constant 0 : index
    %c0_42 = arith.constant 0 : index
    %76 = vector.load %arg9[%c0_40, %c0_41, %c0_42] : memref<1x8x128xf32, #tpu.memory_space<vmem>>, vector<1x8x128xf32>
    %77 = vector.shape_cast %76 : vector<1x8x128xf32> to vector<8x128xf32>
    %78 = vector.shape_cast %75 : vector<8x128xf32> to vector<1x8x128xf32>
    tpu.vector_store %arg9[%c0_40, %c0_41, %c0_42], %78 {strides = array<i32>} : memref<1x8x128xf32, #tpu.memory_space<vmem>>, vector<1x8x128xf32>,
    return
  }
  func.func @transform_0(%arg0: i32, %arg1: i32) -> (i32, i32, i32, i32) {
    %c0_i32 = arith.constant 0 : i32
    %c0_i32_0 = arith.constant 0 : i32
    %c0_i32_1 = arith.constant 0 : i32
    return %arg0, %arg1, %c0_i32, %c0_i32_0 : i32, i32, i32, i32
  }
  func.func @transform_1(%arg0: i32, %arg1: i32) -> (i32, i32, i32) {
    %c0_i32 = arith.constant 0 : i32
    %c0_i32_0 = arith.constant 0 : i32
    %c0_i32_1 = arith.constant 0 : i32
    %c0_i32_2 = arith.constant 0 : i32
    return %c0_i32, %c0_i32_0, %c0_i32_1 : i32, i32, i32
  }
  func.func @transform_2(%arg0: i32, %arg1: i32) -> (i32, i32) {
    %c0_i32 = arith.constant 0 : i32
    %c0_i32_0 = arith.constant 0 : i32
    %c0_i32_1 = arith.constant 0 : i32
    return %c0_i32, %c0_i32_0 : i32, i32
  }
  func.func @transform_3(%arg0: i32, %arg1: i32) -> (i32, i32, i32) {
    %c0_i32 = arith.constant 0 : i32
    %c0_i32_0 = arith.constant 0 : i32
    %c0_i32_1 = arith.constant 0 : i32
    %c0_i32_2 = arith.constant 0 : i32
    return %c0_i32, %c0_i32_0, %c0_i32_1 : i32, i32, i32
  }
  func.func @transform_4(%arg0: i32, %arg1: i32) -> (i32, i32) {
    %c0_i32 = arith.constant 0 : i32
    %c0_i32_0 = arith.constant 0 : i32
    %c0_i32_1 = arith.constant 0 : i32
    return %c0_i32, %c0_i32_0 : i32, i32
  }
  func.func @transform_5(%arg0: i32, %arg1: i32) -> (i32, i32) {
    %c0_i32 = arith.constant 0 : i32
    %c0_i32_0 = arith.constant 0 : i32
    %c0_i32_1 = arith.constant 0 : i32
    return %c0_i32, %c0_i32_0 : i32, i32
  }
  func.func @transform_6(%arg0: i32, %arg1: i32) -> (i32, i32) {
    %c0_i32 = arith.constant 0 : i32
    %c0_i32_0 = arith.constant 0 : i32
    %c0_i32_1 = arith.constant 0 : i32
    return %c0_i32, %c0_i32_0 : i32, i32
  }
  func.func @transform_7(%arg0: i32, %arg1: i32) -> (i32, i32, i32) {
    %c0_i32 = arith.constant 0 : i32
    %c0_i32_0 = arith.constant 0 : i32
    return %arg0, %c0_i32, %arg1 : i32, i32, i32
  }
}

</mosaic_0001>

<llo_original>
// kernel: tpu_custom_call.1
$region0: #{tpu_custom_call.1}
  #allocation0 [shape = 'u32[]', space=smem, size = 0x4, offset = 0x4, fixed_abs, tag = 'smem constant byte address 0x4 - core index']
  #allocation1 [shape = 'u32[72,128]{1,0:T(1,128)}', space=vmem, size = 0x9000, scoped, tag = 'internal scratch']
  %s0 = inlined_call_operand.vmem [shape: bf16[2,1,144,4], index: 0, kind: input, shape index: {}]
  %s1 = inlined_call_operand.vmem [shape: bf16[3,4,8], index: 1, kind: input, shape index: {}]
  %s2 = inlined_call_operand.vmem [shape: f32[1,8], index: 2, kind: input, shape index: {}]
  %s3 = inlined_call_operand.vmem [shape: bf16[3,8,8], index: 3, kind: input, shape index: {}]
  %s4 = inlined_call_operand.vmem [shape: f32[1,8], index: 4, kind: input, shape index: {}]
  %s5 = inlined_call_operand.vmem [shape: bf16[4,8], index: 5, kind: input, shape index: {}]
  %s6 = inlined_call_operand.vmem [shape: f32[1,8], index: 6, kind: input, shape index: {}]
  %s7 = inlined_call_operand.hbm [shape: f32[2,8,128], index: 7, kind: output, shape index: {}]
  %s8 = sld [smem:[#allocation0]]
  $region61: #{tpu_custom_call.1} parent=0
    _
  %s10 = ssub.s32 1, %s8
  %s11 = scalar_select 0, %s10, %s8
  $region1: #{tpu_custom_call.1} parent=0
    #allocation2 [shape = 'u8[8192]{0}', space=vmem, size = 0x2000, scoped, tag = 'output window, operand 0']
    #allocation3 [shape = 's32[2]{0}', space=sflag, size = 0x8, scoped, tag = 'scoped memory for tpu_custom_call.1']
    %12 = vsyncpa [#allocation3], 0
    %s13 = scalar_lea.sflag [#allocation3], 1
    %14 = vsyncpa %s13, 0
    loop: start=0, step=1, limit=4
    $region2: #{tpu_custom_call.1} parent=1 // loop_pre_header
      _
    $region3: #{tpu_custom_call.1} parent=1 // loop_header
      %s16 = sphi 0, %s20
      %p17 = scmp.ge.s32.totalorder %s16, 4
      %s23 = sphi 0, %s35
      %s24 = sphi 0, %s31
      %s25 = sphi 0, %s23
      %s26 = sphi 0, %s24
      %s27 = sphi 0, %s25
      %s28 = sphi 0, %s26
      %s40 = sphi 0, %s42
      %s43 = sphi 0, %s40
      %s44 = sphi 0, %s43
      %s60 = sphi 0, %s44
      %s64 = sphi 0, %s64
      %s66 = sphi 0, %s64
      %s67 = sphi 0, %s66
      %s81 = sphi 0, %s67
      %s85 = sphi 0, %s85
      %s87 = sphi 0, %s85
      %s88 = sphi 0, %s87
      %s102 = sphi 0, %s88
      %s106 = sphi 0, %s106
      %s108 = sphi 0, %s106
      %s109 = sphi 0, %s108
      %s123 = sphi 0, %s109
      %s127 = sphi 0, %s127
      %s129 = sphi 0, %s127
      %s130 = sphi 0, %s129
      %s144 = sphi 0, %s130
      %s148 = sphi 0, %s148
      %s150 = sphi 0, %s148
      %s151 = sphi 0, %s150
      %s165 = sphi 0, %s151
      %s169 = sphi 0, %s169
      %s171 = sphi 0, %s169
      %s172 = sphi 0, %s171
      %s186 = sphi 0, %s172
      %s194 = sphi 0, %s196
      %s197 = sphi 0, %s194
      %s198 = sphi 0, %s197
      %s214 = sphi 0, %s198
    $region4: #{tpu_custom_call.1} parent=1 // loop_header_branch
      %19 = sbr.rel (%p17) target = $region8
    $region5: #{tpu_custom_call.1} parent=1 // loop_body
      %s21 = ssub.s32 %s16, 1
      %s22 = ssub.s32 %s16, 2
      %s29 = sadd.s32 1, %s24
      %p30 = scmp.ge.s32.totalorder %s29, 1
      %s31 = scalar_select %p30, 0, %s29
      %s32 = sadd.s32 1, %s23
      %s33 = scalar_select %p30, %s32, %s23
      %p34 = scmp.ge.s32.totalorder %s33, 2
      %s35 = scalar_select %p34, 0, %s33
      %s36 = ssub.s32 %s23, %s35
      %s37 = ssub.s32 %s24, %s31
      %s38 = sor.u32 %s36, %s37
      %p39 = scmp.eq.s32.totalorder %s38, 0
      %s41 = sadd.s32 %s40, 1
      %s42 = scalar_select %p39, %s40, %s41
      %p45 = pneg %p39
      %p46 = scmp.eq.s32.totalorder %s16, 1
      %p47 = por %p45, %p46
      %p48 = scmp.ne.s32.totalorder %s40, %s43
      %p49 = scmp.eq.s32.totalorder %s16, 0
      %p50 = por %p48, %p49
      %p51 = scmp.ne.s32.totalorder %s40, %s43
      %p52 = scmp.eq.s32.totalorder %s21, 1
      %p53 = por %p51, %p52
      %p54 = scmp.ne.s32.totalorder %s43, %s44
      %p55 = scmp.eq.s32.totalorder %s21, 0
      %p56 = por %p54, %p55
      %p57 = scmp.ne.s32.totalorder %s43, %s44
      %p58 = scmp.eq.s32.totalorder %s22, 1
      %p59 = por %p57, %p58
      %p61 = scmp.ne.s32.totalorder %s44, %s60
      %p62 = scmp.eq.s32.totalorder %s22, 0
      %p63 = por %p61, %p62
      %s65 = sadd.s32 %s64, 1
      %p68 = scmp.eq.s32.totalorder %s16, 1
      %p69 = scmp.ne.s32.totalorder %s64, %s66
      %p70 = scmp.eq.s32.totalorder %s16, 0
      %p71 = por %p69, %p70
      %p72 = scmp.ne.s32.totalorder %s64, %s66
      %p73 = scmp.eq.s32.totalorder %s21, 1
      %p74 = por %p72, %p73
      %p75 = scmp.ne.s32.totalorder %s66, %s67
      %p76 = scmp.eq.s32.totalorder %s21, 0
      %p77 = por %p75, %p76
      %p78 = scmp.ne.s32.totalorder %s66, %s67
      %p79 = scmp.eq.s32.totalorder %s22, 1
      %p80 = por %p78, %p79
      %p82 = scmp.ne.s32.totalorder %s67, %s81
      %p83 = scmp.eq.s32.totalorder %s22, 0
      %p84 = por %p82, %p83
      %s86 = sadd.s32 %s85, 1
      %p89 = scmp.eq.s32.totalorder %s16, 1
      %p90 = scmp.ne.s32.totalorder %s85, %s87
      %p91 = scmp.eq.s32.totalorder %s16, 0
      %p92 = por %p90, %p91
      %p93 = scmp.ne.s32.totalorder %s85, %s87
      %p94 = scmp.eq.s32.totalorder %s21, 1
      %p95 = por %p93, %p94
      %p96 = scmp.ne.s32.totalorder %s87, %s88
      %p97 = scmp.eq.s32.totalorder %s21, 0
      %p98 = por %p96, %p97
      %p99 = scmp.ne.s32.totalorder %s87, %s88
      %p100 = scmp.eq.s32.totalorder %s22, 1
      %p101 = por %p99, %p100
      %p103 = scmp.ne.s32.totalorder %s88, %s102
      %p104 = scmp.eq.s32.totalorder %s22, 0
      %p105 = por %p103, %p104
      %s107 = sadd.s32 %s106, 1
      %p110 = scmp.eq.s32.totalorder %s16, 1
      %p111 = scmp.ne.s32.totalorder %s106, %s108
      %p112 = scmp.eq.s32.totalorder %s16, 0
      %p113 = por %p111, %p112
      %p114 = scmp.ne.s32.totalorder %s106, %s108
      %p115 = scmp.eq.s32.totalorder %s21, 1
      %p116 = por %p114, %p115
      %p117 = scmp.ne.s32.totalorder %s108, %s109
      %p118 = scmp.eq.s32.totalorder %s21, 0
      %p119 = por %p117, %p118
      %p120 = scmp.ne.s32.totalorder %s108, %s109
      %p121 = scmp.eq.s32.totalorder %s22, 1
      %p122 = por %p120, %p121
      %p124 = scmp.ne.s32.totalorder %s109, %s123
      %p125 = scmp.eq.s32.totalorder %s22, 0
      %p126 = por %p124, %p125
      %s128 = sadd.s32 %s127, 1
      %p131 = scmp.eq.s32.totalorder %s16, 1
      %p132 = scmp.ne.s32.totalorder %s127, %s129
      %p133 = scmp.eq.s32.totalorder %s16, 0
      %p134 = por %p132, %p133
      %p135 = scmp.ne.s32.totalorder %s127, %s129
      %p136 = scmp.eq.s32.totalorder %s21, 1
      %p137 = por %p135, %p136
      %p138 = scmp.ne.s32.totalorder %s129, %s130
      %p139 = scmp.eq.s32.totalorder %s21, 0
      %p140 = por %p138, %p139
      %p141 = scmp.ne.s32.totalorder %s129, %s130
      %p142 = scmp.eq.s32.totalorder %s22, 1
      %p143 = por %p141, %p142
      %p145 = scmp.ne.s32.totalorder %s130, %s144
      %p146 = scmp.eq.s32.totalorder %s22, 0
      %p147 = por %p145, %p146
      %s149 = sadd.s32 %s148, 1
      %p152 = scmp.eq.s32.totalorder %s16, 1
      %p153 = scmp.ne.s32.totalorder %s148, %s150
      %p154 = scmp.eq.s32.totalorder %s16, 0
      %p155 = por %p153, %p154
      %p156 = scmp.ne.s32.totalorder %s148, %s150
      %p157 = scmp.eq.s32.totalorder %s21, 1
      %p158 = por %p156, %p157
      %p159 = scmp.ne.s32.totalorder %s150, %s151
      %p160 = scmp.eq.s32.totalorder %s21, 0
      %p161 = por %p159, %p160
      %p162 = scmp.ne.s32.totalorder %s150, %s151
      %p163 = scmp.eq.s32.totalorder %s22, 1
      %p164 = por %p162, %p163
      %p166 = scmp.ne.s32.totalorder %s151, %s165
      %p167 = scmp.eq.s32.totalorder %s22, 0
      %p168 = por %p166, %p167
      %s170 = sadd.s32 %s169, 1
      %p173 = scmp.eq.s32.totalorder %s16, 1
      %p174 = scmp.ne.s32.totalorder %s169, %s171
      %p175 = scmp.eq.s32.totalorder %s16, 0
      %p176 = por %p174, %p175
      %p177 = scmp.ne.s32.totalorder %s169, %s171
      %p178 = scmp.eq.s32.totalorder %s21, 1
      %p179 = por %p177, %p178
      %p180 = scmp.ne.s32.totalorder %s171, %s172
      %p181 = scmp.eq.s32.totalorder %s21, 0
      %p182 = por %p180, %p181
      %p183 = scmp.ne.s32.totalorder %s171, %s172
      %p184 = scmp.eq.s32.totalorder %s22, 1
      %p185 = por %p183, %p184
      %p187 = scmp.ne.s32.totalorder %s172, %s186
      %p188 = scmp.eq.s32.totalorder %s22, 0
      %p189 = por %p187, %p188
      %s190 = ssub.s32 %s23, %s35
      %s191 = ssub.s32 %s24, %s31
      %s192 = sor.u32 %s190, %s191
      %p193 = scmp.eq.s32.totalorder %s192, 0
      %s195 = sadd.s32 %s194, 1
      %s196 = scalar_select %p193, %s194, %s195
      %p199 = pneg %p193
      %p200 = scmp.eq.s32.totalorder %s16, 1
      %p201 = por %p199, %p200
      %p202 = scmp.ne.s32.totalorder %s194, %s197
      %p203 = scmp.eq.s32.totalorder %s16, 0
      %p204 = por %p202, %p203
      %p205 = scmp.ne.s32.totalorder %s194, %s197
      %p206 = scmp.eq.s32.totalorder %s21, 1
      %p207 = por %p205, %p206
      %p208 = scmp.ne.s32.totalorder %s197, %s198
      %p209 = scmp.eq.s32.totalorder %s21, 0
      %p210 = por %p208, %p209
      %p211 = scmp.ne.s32.totalorder %s197, %s198
      %p212 = scmp.eq.s32.totalorder %s22, 1
      %p213 = por %p211, %p212
      %p215 = scmp.ne.s32.totalorder %s198, %s214
      %p216 = scmp.eq.s32.totalorder %s22, 0
      %p217 = por %p215, %p216
      %p218 = scmp.le.s32.totalorder 1, %s16
      %p219 = scmp.lt.s32.totalorder %s16, 3
      %p220 = pnand %p218, %p219
      %p221 = pneg %p220
      // Predicated region
      $region9: #{tpu_custom_call.1} parent=5 // pred_check
        _
      $region10: #{tpu_custom_call.1} parent=5 // pred_check_branch
        %223 = sbr.rel (%p220) target = $region12
      $region11: #{tpu_custom_call.1} parent=5 // pred_region
        %s224 = ssub.s32 %s16, 1
        // Predicated region
        $region13: #{tpu_custom_call.1} parent=11 // pred_check
          %p225 = pneg %p77
        $region14: #{tpu_custom_call.1} parent=11 // pred_check_branch
          %227 = sbr.rel (%p225) target = $region16
        $region15: #{tpu_custom_call.1} parent=11 // pred_region
          _
        $region16: #{tpu_custom_call.1} parent=11 // pred_fallthru
          _
        // Predicated region
        $region17: #{tpu_custom_call.1} parent=11 // pred_check
          %p228 = pneg %p98
        $region18: #{tpu_custom_call.1} parent=11 // pred_check_branch
          %230 = sbr.rel (%p228) target = $region20
        $region19: #{tpu_custom_call.1} parent=11 // pred_region
          _
        $region20: #{tpu_custom_call.1} parent=11 // pred_fallthru
          _
        // Predicated region
        $region21: #{tpu_custom_call.1} parent=11 // pred_check
          %p231 = pneg %p119
        $region22: #{tpu_custom_call.1} parent=11 // pred_check_branch
          %233 = sbr.rel (%p231) target = $region24
        $region23: #{tpu_custom_call.1} parent=11 // pred_region
          _
        $region24: #{tpu_custom_call.1} parent=11 // pred_fallthru
          _
        // Predicated region
        $region25: #{tpu_custom_call.1} parent=11 // pred_check
          %p234 = pneg %p140
        $region26: #{tpu_custom_call.1} parent=11 // pred_check_branch
          %236 = sbr.rel (%p234) target = $region28
        $region27: #{tpu_custom_call.1} parent=11 // pred_region
          _
        $region28: #{tpu_custom_call.1} parent=11 // pred_fallthru
          _
        // Predicated region
        $region29: #{tpu_custom_call.1} parent=11 // pred_check
          %p237 = pneg %p161
        $region30: #{tpu_custom_call.1} parent=11 // pred_check_branch
          %239 = sbr.rel (%p237) target = $region32
        $region31: #{tpu_custom_call.1} parent=11 // pred_region
          _
        $region32: #{tpu_custom_call.1} parent=11 // pred_fallthru
          _
        // Predicated region
        $region33: #{tpu_custom_call.1} parent=11 // pred_check
          %p240 = pneg %p182
        $region34: #{tpu_custom_call.1} parent=11 // pred_check_branch
          %242 = sbr.rel (%p240) target = $region36
        $region35: #{tpu_custom_call.1} parent=11 // pred_region
          _
        $region36: #{tpu_custom_call.1} parent=11 // pred_fallthru
          _
      $region12: #{tpu_custom_call.1} parent=5 // pred_fallthru
        _
      %p243 = scmp.lt.s32.totalorder %s16, 2
      // Predicated region
      $region37: #{tpu_custom_call.1} parent=5 // pred_check
        %p244 = pneg %p243
      $region38: #{tpu_custom_call.1} parent=5 // pred_check_branch
        %246 = sbr.rel (%p244) target = $region40
      $region39: #{tpu_custom_call.1} parent=5 // pred_region
        // Predicated region
        $region41: #{tpu_custom_call.1} parent=39 // pred_check
          %p247 = pneg %p50
        $region42: #{tpu_custom_call.1} parent=39 // pred_check_branch
          %249 = sbr.rel (%p247) target = $region44
        $region43: #{tpu_custom_call.1} parent=39 // pred_region
          %p250 = scmp.lt.s32.totalorder %s23, 1
          %s251 = scalar_select %p250, %s23, 1
          %p252 = scmp.lt.s32.totalorder %s24, 0
          %s253 = scalar_select %p252, %s24, 0
          %s254 = smul.addr %s253, 18
          %s255 = smul.addr %s251, 18
          %s256 = sadd.s32 %s254, %s255
          %s257 = smul.addr %s256, 4
          %s258 = scalar_lea.vmem %s0, %s257
        $region44: #{tpu_custom_call.1} parent=39 // pred_fallthru
          _
      $region40: #{tpu_custom_call.1} parent=5 // pred_fallthru
        _
      %p259 = scmp.le.s32.totalorder 1, %s16
      %p260 = scmp.lt.s32.totalorder %s16, 3
      %p261 = pnand %p259, %p260
      %p262 = pneg %p261
      // Predicated region
      $region45: #{tpu_custom_call.1} parent=5 // pred_check
        _
      $region46: #{tpu_custom_call.1} parent=5 // pred_check_branch
        %264 = sbr.rel (%p261) target = $region48
      $region47: #{tpu_custom_call.1} parent=5 // pred_region
        %s265 = ssub.s32 %s16, 1
        %p266 = scmp.lt.s32.totalorder %s25, 1
        %s267 = scalar_select %p266, %s25, 1
        %p268 = scmp.lt.s32.totalorder %s26, 0
        %s269 = scalar_select %p268, %s26, 0
        %s270 = smul.addr %s269, 18
        %s271 = smul.addr %s267, 18
        %s272 = sadd.s32 %s270, %s271
        %s273 = smul.addr %s272, 4
        %s274 = scalar_lea.vmem %s0, %s273
        %p275 = pneg %p56
        %p276 = pneg %p53
        %p277 = pneg %p77
        %p278 = pneg %p74
        %p279 = pneg %p98
        %p280 = pneg %p95
        %p281 = pneg %p119
        %p282 = pneg %p116
        %p283 = pneg %p140
        %p284 = pneg %p137
        %p285 = pneg %p161
        %p286 = pneg %p158
        %p287 = pneg %p182
        %p288 = pneg %p179
        %p289 = pneg %p210
        %p290 = pneg %p207
        %s291 = sand.u32 %s197, 1
        %s292 = scalar_lea.sflag [#allocation3], %s291
        %s293 = sand.u32 %s197, 1
        %s294 = smul.addr %s293, 8
        %s295 = scalar_lea.vmem [#allocation2], %s294
        %p296 = scmp.lt.s32.totalorder %s25, 1
        %s297 = scalar_select %p296, %s25, 1
        %p298 = scmp.lt.s32.totalorder %s26, 0
        %s299 = scalar_select %p298, %s26, 0
        %s300 = smul.addr %s299, 18
        %s301 = smul.addr %s297, 18
        %s302 = sadd.s32 %s300, %s301
        %s303 = smul.addr %s302, 4
        %s304 = scalar_lea.vmem %s0, %s303
        %v306 = vld [vmem:[%s304] sm:$0xf]
        %v307 = vld [vmem:[%s304 + $0x4] sm:$0xf]
        %v308 = vld [vmem:[%s304 + $0x8] sm:$0xf]
        %v309 = vld [vmem:[%s304 + $0xc] sm:$0xf]
        %v310 = vld [vmem:[%s304 + $0x10] sm:$0xf]
        %v311 = vld [vmem:[%s304 + $0x14] sm:$0xf]
        %v312 = vld [vmem:[%s304 + $0x18] sm:$0xf]
        %v313 = vld [vmem:[%s304 + $0x1c] sm:$0xf]
        %v314 = vld [vmem:[%s304 + $0x20] sm:$0xf]
        %v315 = vld [vmem:[%s304 + $0x24] sm:$0xf]
        %v316 = vld [vmem:[%s304 + $0x28] sm:$0xf]
        %v317 = vld [vmem:[%s304 + $0x2c] sm:$0xf]
        %v318 = vld [vmem:[%s304 + $0x30] sm:$0xf]
        %v319 = vld [vmem:[%s304 + $0x34] sm:$0xf]
        %v320 = vld [vmem:[%s304 + $0x38] sm:$0xf]
        %v321 = vld [vmem:[%s304 + $0x3c] sm:$0xf]
        %v322 = vld [vmem:[%s304 + $0x40] sm:$0xf]
        %v323 = vld [vmem:[%s304 + $0x44] sm:$0xf]
        %v324 = vld [vmem:[%s1] sm:$0x3]
        %s325 = scalar_lea.vmem %s1, 2
        %v326 = vld [vmem:[%s325] sm:$0x3]
        %v345 = vunpack.c.l.b16 %v306
        %v346 = vunpack.c.l.b16 %v307
        %v347 = vunpack.c.l.b16 %v308
        %v348 = vunpack.c.l.b16 %v309
        %v349 = vunpack.c.l.b16 %v310
        %v350 = vunpack.c.l.b16 %v311
        %v351 = vunpack.c.l.b16 %v312
        %v352 = vunpack.c.l.b16 %v313
        %v353 = vunpack.c.l.b16 %v314
        %v354 = vunpack.c.l.b16 %v315
        %v355 = vunpack.c.l.b16 %v316
        %v356 = vunpack.c.l.b16 %v317
        %v357 = vunpack.c.l.b16 %v318
        %v358 = vunpack.c.l.b16 %v319
        %v359 = vunpack.c.l.b16 %v320
        %v360 = vunpack.c.l.b16 %v321
        %v361 = vunpack.c.l.b16 %v322
        %v362 = vunpack.c.l.b16 %v323
        %v363 = vpack.c.b16 %v346, %v345
        %v364 = vpack.c.b16 %v348, %v347
        %v365 = vpack.c.b16 %v350, %v349
        %v366 = vpack.c.b16 %v352, %v351
        %v367 = vpack.c.b16 %v354, %v353
        %v368 = vpack.c.b16 %v356, %v355
        %v369 = vpack.c.b16 %v358, %v357
        %v370 = vpack.c.b16 %v360, %v359
        %v371 = vpack.c.b16 %v362, %v361
        %vm372 = vcmask 1044480
        %v373 = vrot.slane %v363, 3
        %v374 = vrot.slane %v364, 3
        %v375 = vsel %vm372, %v373, %v374
        %v376 = vrot.slane %v365, 3
        %v377 = vsel %vm372, %v374, %v376
        %v378 = vrot.slane %v366, 3
        %v379 = vsel %vm372, %v376, %v378
        %v380 = vrot.slane %v367, 3
        %v381 = vsel %vm372, %v378, %v380
        %v382 = vrot.slane %v368, 3
        %v383 = vsel %vm372, %v380, %v382
        %v384 = vrot.slane %v369, 3
        %v385 = vsel %vm372, %v382, %v384
        %v386 = vrot.slane %v370, 3
        %v387 = vsel %vm372, %v384, %v386
        %v388 = vrot.slane %v371, 3
        %v389 = vsel %vm372, %v386, %v388
        %vm390 = vcmask 31744
        %v392 = vsel %vm390, %v375, 0
        %v395 = vsel %vm390, %v377, 0
        %v398 = vsel %vm390, %v379, 0
        %v401 = vsel %vm390, %v381, 0
        %v404 = vsel %vm390, %v383, 0
        %v407 = vsel %vm390, %v385, 0
        %v410 = vsel %vm390, %v387, 0
        %v413 = vsel %vm390, %v389, 0
        %v416 = vsel %vm390, %v388, 0
        %vm418 = vcmask 1041408
        %v420 = vsel %vm418, %v326, 0
        %422 = vmatpush.bf16.msra.mxu0 0
        %423 = vmatpush.bf16.msra.mxu0 0
        %424 = vmatpush.bf16.msra.mxu0 0
        %425 = vmatpush.bf16.msra.mxu0 0
        %426 = vmatpush.bf16.msra.mxu0 0
        %427 = vmatpush.bf16.msra.mxu0 0
        %428 = vmatpush.bf16.msra.mxu0 0
        %429 = vmatpush.bf16.msra.mxu0 %v420
        %430 = vmatmul.bf16.gmra.mxu0 %v392
        %v431 = vpop.f32.mrf.mxu0
        %v432 = vadd.f32 0.0, %v431
        %v433 = vpop.f32.mrf.mxu0
        %v434 = vadd.f32 0.0, %v433
        %435 = vmatmul.bf16.gmra.mxu0 %v395
        %v436 = vpop.f32.mrf.mxu0
        %v437 = vadd.f32 0.0, %v436
        %v438 = vpop.f32.mrf.mxu0
        %v439 = vadd.f32 0.0, %v438
        %440 = vmatmul.bf16.gmra.mxu0 %v398
        %v441 = vpop.f32.mrf.mxu0
        %v442 = vadd.f32 0.0, %v441
        %v443 = vpop.f32.mrf.mxu0
        %v444 = vadd.f32 0.0, %v443
        %445 = vmatmul.bf16.gmra.mxu0 %v401
        %v446 = vpop.f32.mrf.mxu0
        %v447 = vadd.f32 0.0, %v446
        %v448 = vpop.f32.mrf.mxu0
        %v449 = vadd.f32 0.0, %v448
        %450 = vmatmul.bf16.gmra.mxu0 %v404
        %v451 = vpop.f32.mrf.mxu0
        %v452 = vadd.f32 0.0, %v451
        %v453 = vpop.f32.mrf.mxu0
        %v454 = vadd.f32 0.0, %v453
        %455 = vmatmul.bf16.gmra.mxu0 %v407
        %v456 = vpop.f32.mrf.mxu0
        %v457 = vadd.f32 0.0, %v456
        %v458 = vpop.f32.mrf.mxu0
        %v459 = vadd.f32 0.0, %v458
        %460 = vmatmul.bf16.gmra.mxu0 %v410
        %v461 = vpop.f32.mrf.mxu0
        %v462 = vadd.f32 0.0, %v461
        %v463 = vpop.f32.mrf.mxu0
        %v464 = vadd.f32 0.0, %v463
        %465 = vmatmul.bf16.gmra.mxu0 %v413
        %v466 = vpop.f32.mrf.mxu0
        %v467 = vadd.f32 0.0, %v466
        %v468 = vpop.f32.mrf.mxu0
        %v469 = vadd.f32 0.0, %v468
        %470 = vmatmul.bf16.gmra.mxu0 %v416
        %v471 = vpop.f32.mrf.mxu0
        %v472 = vadd.f32 0.0, %v471
        %v473 = vpop.f32.mrf.mxu0
        %474 = vdwg.mxu0
        %vm475 = vcmask 1045504
        %v476 = vrot.slane %v363, 2
        %v477 = vrot.slane %v364, 2
        %v478 = vsel %vm475, %v476, %v477
        %v479 = vrot.slane %v365, 2
        %v480 = vsel %vm475, %v477, %v479
        %v481 = vrot.slane %v366, 2
        %v482 = vsel %vm475, %v479, %v481
        %v483 = vrot.slane %v367, 2
        %v484 = vsel %vm475, %v481, %v483
        %v485 = vrot.slane %v368, 2
        %v486 = vsel %vm475, %v483, %v485
        %v487 = vrot.slane %v369, 2
        %v488 = vsel %vm475, %v485, %v487
        %v489 = vrot.slane %v370, 2
        %v490 = vsel %vm475, %v487, %v489
        %v491 = vrot.slane %v371, 2
        %v492 = vsel %vm475, %v489, %v491
        %v494 = vsel %vm390, %v478, 0
        %v497 = vsel %vm390, %v480, 0
        %v500 = vsel %vm390, %v482, 0
        %v503 = vsel %vm390, %v484, 0
        %v506 = vsel %vm390, %v486, 0
        %v509 = vsel %vm390, %v488, 0
        %v512 = vsel %vm390, %v490, 0
        %v515 = vsel %vm390, %v492, 0
        %v518 = vsel %vm390, %v491, 0
        %v521 = vsel %vm418, %v324, 0
        %523 = vmatpush.bf16.msra.mxu0 0
        %524 = vmatpush.bf16.msra.mxu0 0
        %525 = vmatpush.bf16.msra.mxu0 0
        %526 = vmatpush.bf16.msra.mxu0 0
        %527 = vmatpush.bf16.msra.mxu0 0
        %528 = vmatpush.bf16.msra.mxu0 0
        %529 = vmatpush.bf16.msra.mxu0 0
        %530 = vmatpush.bf16.msra.mxu0 %v521
        %531 = vmatmul.bf16.gmra.mxu0 %v494
        %v532 = vpop.f32.mrf.mxu0
        %v533 = vadd.f32 %v432, %v532
        %v534 = vpop.f32.mrf.mxu0
        %v535 = vadd.f32 %v434, %v534
        %536 = vmatmul.bf16.gmra.mxu0 %v497
        %v537 = vpop.f32.mrf.mxu0
        %v538 = vadd.f32 %v437, %v537
        %v539 = vpop.f32.mrf.mxu0
        %v540 = vadd.f32 %v439, %v539
        %541 = vmatmul.bf16.gmra.mxu0 %v500
        %v542 = vpop.f32.mrf.mxu0
        %v543 = vadd.f32 %v442, %v542
        %v544 = vpop.f32.mrf.mxu0
        %v545 = vadd.f32 %v444, %v544
        %546 = vmatmul.bf16.gmra.mxu0 %v503
        %v547 = vpop.f32.mrf.mxu0
        %v548 = vadd.f32 %v447, %v547
        %v549 = vpop.f32.mrf.mxu0
        %v550 = vadd.f32 %v449, %v549
        %551 = vmatmul.bf16.gmra.mxu0 %v506
        %v552 = vpop.f32.mrf.mxu0
        %v553 = vadd.f32 %v452, %v552
        %v554 = vpop.f32.mrf.mxu0
        %v555 = vadd.f32 %v454, %v554
        %556 = vmatmul.bf16.gmra.mxu0 %v509
        %v557 = vpop.f32.mrf.mxu0
        %v558 = vadd.f32 %v457, %v557
        %v559 = vpop.f32.mrf.mxu0
        %v560 = vadd.f32 %v459, %v559
        %561 = vmatmul.bf16.gmra.mxu0 %v512
        %v562 = vpop.f32.mrf.mxu0
        %v563 = vadd.f32 %v462, %v562
        %v564 = vpop.f32.mrf.mxu0
        %v565 = vadd.f32 %v464, %v564
        %566 = vmatmul.bf16.gmra.mxu0 %v515
        %v567 = vpop.f32.mrf.mxu0
        %v568 = vadd.f32 %v467, %v567
        %v569 = vpop.f32.mrf.mxu0
        %v570 = vadd.f32 %v469, %v569
        %571 = vmatmul.bf16.gmra.mxu0 %v518
        %v572 = vpop.f32.mrf.mxu0
        %v573 = vadd.f32 %v472, %v572
        %v574 = vpop.f32.mrf.mxu0
        %575 = vdwg.mxu0
        %s576 = scalar_lea.vmem %s1, 4
        %v577 = vld [vmem:[%s576] sm:$0x3]
        %v578 = vpack.c.b16 %v347, %v346
        %v579 = vpack.c.b16 %v349, %v348
        %v580 = vpack.c.b16 %v351, %v350
        %v581 = vpack.c.b16 %v353, %v352
        %v582 = vpack.c.b16 %v355, %v354
        %v583 = vpack.c.b16 %v357, %v356
        %v584 = vpack.c.b16 %v359, %v358
        %v585 = vpack.c.b16 %v361, %v360
        %v586 = vpack.c.b16 %v362, %v362
        %v588 = vsel %vm390, %v578, 0
        %v591 = vsel %vm390, %v579, 0
        %v594 = vsel %vm390, %v580, 0
        %v597 = vsel %vm390, %v581, 0
        %v600 = vsel %vm390, %v582, 0
        %v603 = vsel %vm390, %v583, 0
        %v606 = vsel %vm390, %v584, 0
        %v609 = vsel %vm390, %v585, 0
        %v612 = vsel %vm390, %v586, 0
        %v615 = vsel %vm418, %v577, 0
        %617 = vmatpush.bf16.msra.mxu0 0
        %618 = vmatpush.bf16.msra.mxu0 0
        %619 = vmatpush.bf16.msra.mxu0 0
        %620 = vmatpush.bf16.msra.mxu0 0
        %621 = vmatpush.bf16.msra.mxu0 0
        %622 = vmatpush.bf16.msra.mxu0 0
        %623 = vmatpush.bf16.msra.mxu0 0
        %624 = vmatpush.bf16.msra.mxu0 %v615
        %625 = vmatmul.bf16.gmra.mxu0 %v588
        %v626 = vpop.f32.mrf.mxu0
        %v627 = vadd.f32 0.0, %v626
        %v628 = vpop.f32.mrf.mxu0
        %v629 = vadd.f32 0.0, %v628
        %630 = vmatmul.bf16.gmra.mxu0 %v591
        %v631 = vpop.f32.mrf.mxu0
        %v632 = vadd.f32 0.0, %v631
        %v633 = vpop.f32.mrf.mxu0
        %v634 = vadd.f32 0.0, %v633
        %635 = vmatmul.bf16.gmra.mxu0 %v594
        %v636 = vpop.f32.mrf.mxu0
        %v637 = vadd.f32 0.0, %v636
        %v638 = vpop.f32.mrf.mxu0
        %v639 = vadd.f32 0.0, %v638
        %640 = vmatmul.bf16.gmra.mxu0 %v597
        %v641 = vpop.f32.mrf.mxu0
        %v642 = vadd.f32 0.0, %v641
        %v643 = vpop.f32.mrf.mxu0
        %v644 = vadd.f32 0.0, %v643
        %645 = vmatmul.bf16.gmra.mxu0 %v600
        %v646 = vpop.f32.mrf.mxu0
        %v647 = vadd.f32 0.0, %v646
        %v648 = vpop.f32.mrf.mxu0
        %v649 = vadd.f32 0.0, %v648
        %650 = vmatmul.bf16.gmra.mxu0 %v603
        %v651 = vpop.f32.mrf.mxu0
        %v652 = vadd.f32 0.0, %v651
        %v653 = vpop.f32.mrf.mxu0
        %v654 = vadd.f32 0.0, %v653
        %655 = vmatmul.bf16.gmra.mxu0 %v606
        %v656 = vpop.f32.mrf.mxu0
        %v657 = vadd.f32 0.0, %v656
        %v658 = vpop.f32.mrf.mxu0
        %v659 = vadd.f32 0.0, %v658
        %660 = vmatmul.bf16.gmra.mxu0 %v609
        %v661 = vpop.f32.mrf.mxu0
        %v662 = vadd.f32 0.0, %v661
        %v663 = vpop.f32.mrf.mxu0
        %v664 = vadd.f32 0.0, %v663
        %665 = vmatmul.bf16.gmra.mxu0 %v612
        %v666 = vpop.f32.mrf.mxu0
        %v667 = vadd.f32 0.0, %v666
        %v668 = vpop.f32.mrf.mxu0
        %669 = vdwg.mxu0
        %v670 = vadd.f32 %v533, %v627
        %v671 = vadd.f32 %v535, %v629
        %v672 = vadd.f32 %v538, %v632
        %v673 = vadd.f32 %v540, %v634
        %v674 = vadd.f32 %v543, %v637
        %v675 = vadd.f32 %v545, %v639
        %v676 = vadd.f32 %v548, %v642
        %v677 = vadd.f32 %v550, %v644
        %v678 = vadd.f32 %v553, %v647
        %v679 = vadd.f32 %v555, %v649
        %v680 = vadd.f32 %v558, %v652
        %v681 = vadd.f32 %v560, %v654
        %v682 = vadd.f32 %v563, %v657
        %v683 = vadd.f32 %v565, %v659
        %v684 = vadd.f32 %v568, %v662
        %v685 = vadd.f32 %v570, %v664
        %v686 = vadd.f32 %v573, %v667
        %v687 = vld [vmem:[%s2] sm:$0x1]
        %v689 = vperm.slane %v687, 0
        %v691 = vadd.f32 %v670, %v689
        %v692 = vadd.f32 %v671, %v689
        %v693 = vadd.f32 %v672, %v689
        %v694 = vadd.f32 %v673, %v689
        %v695 = vadd.f32 %v674, %v689
        %v696 = vadd.f32 %v675, %v689
        %v697 = vadd.f32 %v676, %v689
        %v698 = vadd.f32 %v677, %v689
        %v699 = vadd.f32 %v678, %v689
        %v700 = vadd.f32 %v679, %v689
        %v701 = vadd.f32 %v680, %v689
        %v702 = vadd.f32 %v681, %v689
        %v703 = vadd.f32 %v682, %v689
        %v704 = vadd.f32 %v683, %v689
        %v705 = vadd.f32 %v684, %v689
        %v706 = vadd.f32 %v685, %v689
        %v707 = vadd.f32 %v686, %v689
        %vm708 = vcmp.gt.f32.partialorder %v691, 0.0
        %vm709 = vcmp.gt.f32.partialorder %v692, 0.0
        %vm710 = vcmp.gt.f32.partialorder %v693, 0.0
        %vm711 = vcmp.gt.f32.partialorder %v694, 0.0
        %vm712 = vcmp.gt.f32.partialorder %v695, 0.0
        %vm713 = vcmp.gt.f32.partialorder %v696, 0.0
        %vm714 = vcmp.gt.f32.partialorder %v697, 0.0
        %vm715 = vcmp.gt.f32.partialorder %v698, 0.0
        %vm716 = vcmp.gt.f32.partialorder %v699, 0.0
        %vm717 = vcmp.gt.f32.partialorder %v700, 0.0
        %vm718 = vcmp.gt.f32.partialorder %v701, 0.0
        %vm719 = vcmp.gt.f32.partialorder %v702, 0.0
        %vm720 = vcmp.gt.f32.partialorder %v703, 0.0
        %vm721 = vcmp.gt.f32.partialorder %v704, 0.0
        %vm722 = vcmp.gt.f32.partialorder %v705, 0.0
        %vm723 = vcmp.gt.f32.partialorder %v706, 0.0
        %vm724 = vcmp.gt.f32.partialorder %v707, 0.0
        %v725 = vmul.f32 %v691, 0.01
        %v726 = vmul.f32 %v692, 0.01
        %v727 = vmul.f32 %v693, 0.01
        %v728 = vmul.f32 %v694, 0.01
        %v729 = vmul.f32 %v695, 0.01
        %v730 = vmul.f32 %v696, 0.01
        %v731 = vmul.f32 %v697, 0.01
        %v732 = vmul.f32 %v698, 0.01
        %v733 = vmul.f32 %v699, 0.01
        %v734 = vmul.f32 %v700, 0.01
        %v735 = vmul.f32 %v701, 0.01
        %v736 = vmul.f32 %v702, 0.01
        %v737 = vmul.f32 %v703, 0.01
        %v738 = vmul.f32 %v704, 0.01
        %v739 = vmul.f32 %v705, 0.01
        %v740 = vmul.f32 %v706, 0.01
        %v741 = vmul.f32 %v707, 0.01
        %v742 = vsel %vm708, %v691, %v725
        %v743 = vsel %vm709, %v692, %v726
        %v744 = vsel %vm710, %v693, %v727
        %v745 = vsel %vm711, %v694, %v728
        %v746 = vsel %vm712, %v695, %v729
        %v747 = vsel %vm713, %v696, %v730
        %v748 = vsel %vm714, %v697, %v731
        %v749 = vsel %vm715, %v698, %v732
        %v750 = vsel %vm716, %v699, %v733
        %v751 = vsel %vm717, %v700, %v734
        %v752 = vsel %vm718, %v701, %v735
        %v753 = vsel %vm719, %v702, %v736
        %v754 = vsel %vm720, %v703, %v737
        %v755 = vsel %vm721, %v704, %v738
        %v756 = vsel %vm722, %v705, %v739
        %v757 = vsel %vm723, %v706, %v740
        %v758 = vsel %vm724, %v707, %v741
        %v759 = vlaneseq
        %v760 = vshrl.u32 %v759, 7
        %v761 = vadd.s32 %v760, 8
        %v762 = vadd.s32 %v760, 16
        %v763 = vadd.s32 %v760, 24
        %v764 = vadd.s32 %v760, 32
        %v765 = vadd.s32 %v760, 40
        %v766 = vadd.s32 %v760, 48
        %v767 = vadd.s32 %v760, 56
        %v768 = vadd.s32 %v760, 64
        %v769 = vadd.s32 %v760, 72
        %v770 = vadd.s32 %v760, 80
        %v771 = vadd.s32 %v760, 88
        %v772 = vadd.s32 %v760, 96
        %v773 = vadd.s32 %v760, 104
        %v774 = vadd.s32 %v760, 112
        %v775 = vadd.s32 %v760, 120
        %v776 = vadd.s32 %v760, 128
        %s777 = smul.u32 %s26, 128
        %v778 = vstv %s777
        %v779 = vadd.s32 %v760, %v778
        %v780 = vadd.s32 %v761, %v778
        %v781 = vadd.s32 %v762, %v778
        %v782 = vadd.s32 %v763, %v778
        %v783 = vadd.s32 %v764, %v778
        %v784 = vadd.s32 %v765, %v778
        %v785 = vadd.s32 %v766, %v778
        %v786 = vadd.s32 %v767, %v778
        %v787 = vadd.s32 %v768, %v778
        %v788 = vadd.s32 %v769, %v778
        %v789 = vadd.s32 %v770, %v778
        %v790 = vadd.s32 %v771, %v778
        %v791 = vadd.s32 %v772, %v778
        %v792 = vadd.s32 %v773, %v778
        %v793 = vadd.s32 %v774, %v778
        %v794 = vadd.s32 %v775, %v778
        %v795 = vadd.s32 %v776, %v778
        %vm796 = vcmp.ge.s32.totalorder %v779, 8
        %vm797 = vcmp.ge.s32.totalorder %v780, 8
        %vm798 = vcmp.ge.s32.totalorder %v781, 8
        %vm799 = vcmp.ge.s32.totalorder %v782, 8
        %vm800 = vcmp.ge.s32.totalorder %v783, 8
        %vm801 = vcmp.ge.s32.totalorder %v784, 8
        %vm802 = vcmp.ge.s32.totalorder %v785, 8
        %vm803 = vcmp.ge.s32.totalorder %v786, 8
        %vm804 = vcmp.ge.s32.totalorder %v787, 8
        %vm805 = vcmp.ge.s32.totalorder %v788, 8
        %vm806 = vcmp.ge.s32.totalorder %v789, 8
        %vm807 = vcmp.ge.s32.totalorder %v790, 8
        %vm808 = vcmp.ge.s32.totalorder %v791, 8
        %vm809 = vcmp.ge.s32.totalorder %v792, 8
        %vm810 = vcmp.ge.s32.totalorder %v793, 8
        %vm811 = vcmp.ge.s32.totalorder %v794, 8
        %vm812 = vcmp.ge.s32.totalorder %v795, 8
        %v813 = vsel %vm796, %v742, 0.0
        %v814 = vsel %vm797, %v743, 0.0
        %v815 = vsel %vm798, %v744, 0.0
        %v816 = vsel %vm799, %v745, 0.0
        %v817 = vsel %vm800, %v746, 0.0
        %v818 = vsel %vm801, %v747, 0.0
        %v819 = vsel %vm802, %v748, 0.0
        %v820 = vsel %vm803, %v749, 0.0
        %v821 = vsel %vm804, %v750, 0.0
        %v822 = vsel %vm805, %v751, 0.0
        %v823 = vsel %vm806, %v752, 0.0
        %v824 = vsel %vm807, %v753, 0.0
        %v825 = vsel %vm808, %v754, 0.0
        %v826 = vsel %vm809, %v755, 0.0
        %v827 = vsel %vm810, %v756, 0.0
        %v828 = vsel %vm811, %v757, 0.0
        %v829 = vsel %vm812, %v758, 0.0
        %v830 = vpack.c.bf16 %v813, %v813
        %v831 = vpack.c.bf16 %v814, %v814
        %v832 = vpack.c.bf16 %v815, %v815
        %v833 = vpack.c.bf16 %v816, %v816
        %v834 = vpack.c.bf16 %v817, %v817
        %v835 = vpack.c.bf16 %v818, %v818
        %v836 = vpack.c.bf16 %v819, %v819
        %v837 = vpack.c.bf16 %v820, %v820
        %v838 = vpack.c.bf16 %v821, %v821
        %v839 = vpack.c.bf16 %v822, %v822
        %v840 = vpack.c.bf16 %v823, %v823
        %v841 = vpack.c.bf16 %v824, %v824
        %v842 = vpack.c.bf16 %v825, %v825
        %v843 = vpack.c.bf16 %v826, %v826
        %v844 = vpack.c.bf16 %v827, %v827
        %v845 = vpack.c.bf16 %v828, %v828
        %v846 = vpack.c.bf16 %v829, %v829
        %v847 = vld [vmem:[%s3] sm:$0xf]
        %s848 = scalar_lea.vmem %s3, 4
        %v849 = vld [vmem:[%s848] sm:$0xf]
        %v867 = vunpack.c.l.b16 %v830
        %v868 = vunpack.c.l.b16 %v831
        %v869 = vunpack.c.l.b16 %v832
        %v870 = vunpack.c.l.b16 %v833
        %v871 = vunpack.c.l.b16 %v834
        %v872 = vunpack.c.l.b16 %v835
        %v873 = vunpack.c.l.b16 %v836
        %v874 = vunpack.c.l.b16 %v837
        %v875 = vunpack.c.l.b16 %v838
        %v876 = vunpack.c.l.b16 %v839
        %v877 = vunpack.c.l.b16 %v840
        %v878 = vunpack.c.l.b16 %v841
        %v879 = vunpack.c.l.b16 %v842
        %v880 = vunpack.c.l.b16 %v843
        %v881 = vunpack.c.l.b16 %v844
        %v882 = vunpack.c.l.b16 %v845
        %v883 = vunpack.c.l.b16 %v846
        %v884 = vpack.c.b16 %v868, %v867
        %v885 = vpack.c.b16 %v870, %v869
        %v886 = vpack.c.b16 %v872, %v871
        %v887 = vpack.c.b16 %v874, %v873
        %v888 = vpack.c.b16 %v876, %v875
        %v889 = vpack.c.b16 %v878, %v877
        %v890 = vpack.c.b16 %v880, %v879
        %v891 = vpack.c.b16 %v882, %v881
        %v892 = vpack.c.b16 %v883, %v883
        %v893 = vrot.slane %v884, 3
        %v894 = vrot.slane %v885, 3
        %v895 = vsel %vm372, %v893, %v894
        %v896 = vrot.slane %v886, 3
        %v897 = vsel %vm372, %v894, %v896
        %v898 = vrot.slane %v887, 3
        %v899 = vsel %vm372, %v896, %v898
        %v900 = vrot.slane %v888, 3
        %v901 = vsel %vm372, %v898, %v900
        %v902 = vrot.slane %v889, 3
        %v903 = vsel %vm372, %v900, %v902
        %v904 = vrot.slane %v890, 3
        %v905 = vsel %vm372, %v902, %v904
        %v906 = vrot.slane %v891, 3
        %v907 = vsel %vm372, %v904, %v906
        %v908 = vrot.slane %v892, 3
        %v909 = vsel %vm372, %v906, %v908
        %vm910 = vcmask 64512
        %v912 = vsel %vm910, %v895, 0
        %v915 = vsel %vm910, %v897, 0
        %v918 = vsel %vm910, %v899, 0
        %v921 = vsel %vm910, %v901, 0
        %v924 = vsel %vm910, %v903, 0
        %v927 = vsel %vm910, %v905, 0
        %v930 = vsel %vm910, %v907, 0
        %v933 = vsel %vm910, %v909, 0
        %vm935 = vcmask 1043456
        %v937 = vsel %vm935, %v849, 0
        %939 = vmatpush.bf16.msra.mxu0 0
        %940 = vmatpush.bf16.msra.mxu0 0
        %941 = vmatpush.bf16.msra.mxu0 0
        %942 = vmatpush.bf16.msra.mxu0 0
        %943 = vmatpush.bf16.msra.mxu0 0
        %944 = vmatpush.bf16.msra.mxu0 0
        %945 = vmatpush.bf16.msra.mxu0 0
        %946 = vmatpush.bf16.msra.mxu0 %v937
        %947 = vmatmul.bf16.gmra.mxu0 %v912
        %v948 = vpop.f32.mrf.mxu0
        %v949 = vadd.f32 0.0, %v948
        %v950 = vpop.f32.mrf.mxu0
        %v951 = vadd.f32 0.0, %v950
        %952 = vmatmul.bf16.gmra.mxu0 %v915
        %v953 = vpop.f32.mrf.mxu0
        %v954 = vadd.f32 0.0, %v953
        %v955 = vpop.f32.mrf.mxu0
        %v956 = vadd.f32 0.0, %v955
        %957 = vmatmul.bf16.gmra.mxu0 %v918
        %v958 = vpop.f32.mrf.mxu0
        %v959 = vadd.f32 0.0, %v958
        %v960 = vpop.f32.mrf.mxu0
        %v961 = vadd.f32 0.0, %v960
        %962 = vmatmul.bf16.gmra.mxu0 %v921
        %v963 = vpop.f32.mrf.mxu0
        %v964 = vadd.f32 0.0, %v963
        %v965 = vpop.f32.mrf.mxu0
        %v966 = vadd.f32 0.0, %v965
        %967 = vmatmul.bf16.gmra.mxu0 %v924
        %v968 = vpop.f32.mrf.mxu0
        %v969 = vadd.f32 0.0, %v968
        %v970 = vpop.f32.mrf.mxu0
        %v971 = vadd.f32 0.0, %v970
        %972 = vmatmul.bf16.gmra.mxu0 %v927
        %v973 = vpop.f32.mrf.mxu0
        %v974 = vadd.f32 0.0, %v973
        %v975 = vpop.f32.mrf.mxu0
        %v976 = vadd.f32 0.0, %v975
        %977 = vmatmul.bf16.gmra.mxu0 %v930
        %v978 = vpop.f32.mrf.mxu0
        %v979 = vadd.f32 0.0, %v978
        %v980 = vpop.f32.mrf.mxu0
        %v981 = vadd.f32 0.0, %v980
        %982 = vmatmul.bf16.gmra.mxu0 %v933
        %v983 = vpop.f32.mrf.mxu0
        %v984 = vadd.f32 0.0, %v983
        %v985 = vpop.f32.mrf.mxu0
        %v986 = vadd.f32 0.0, %v985
        %987 = vdwg.mxu0
        %v988 = vrot.slane %v884, 2
        %v989 = vrot.slane %v885, 2
        %v990 = vsel %vm475, %v988, %v989
        %v991 = vrot.slane %v886, 2
        %v992 = vsel %vm475, %v989, %v991
        %v993 = vrot.slane %v887, 2
        %v994 = vsel %vm475, %v991, %v993
        %v995 = vrot.slane %v888, 2
        %v996 = vsel %vm475, %v993, %v995
        %v997 = vrot.slane %v889, 2
        %v998 = vsel %vm475, %v995, %v997
        %v999 = vrot.slane %v890, 2
        %v1000 = vsel %vm475, %v997, %v999
        %v1001 = vrot.slane %v891, 2
        %v1002 = vsel %vm475, %v999, %v1001
        %v1003 = vrot.slane %v892, 2
        %v1004 = vsel %vm475, %v1001, %v1003
        %v1006 = vsel %vm910, %v990, 0
        %v1009 = vsel %vm910, %v992, 0
        %v1012 = vsel %vm910, %v994, 0
        %v1015 = vsel %vm910, %v996, 0
        %v1018 = vsel %vm910, %v998, 0
        %v1021 = vsel %vm910, %v1000, 0
        %v1024 = vsel %vm910, %v1002, 0
        %v1027 = vsel %vm910, %v1004, 0
        %v1030 = vsel %vm935, %v847, 0
        %1032 = vmatpush.bf16.msra.mxu0 0
        %1033 = vmatpush.bf16.msra.mxu0 0
        %1034 = vmatpush.bf16.msra.mxu0 0
        %1035 = vmatpush.bf16.msra.mxu0 0
        %1036 = vmatpush.bf16.msra.mxu0 0
        %1037 = vmatpush.bf16.msra.mxu0 0
        %1038 = vmatpush.bf16.msra.mxu0 0
        %1039 = vmatpush.bf16.msra.mxu0 %v1030
        %1040 = vmatmul.bf16.gmra.mxu0 %v1006
        %v1041 = vpop.f32.mrf.mxu0
        %v1042 = vadd.f32 %v949, %v1041
        %v1043 = vpop.f32.mrf.mxu0
        %v1044 = vadd.f32 %v951, %v1043
        %1045 = vmatmul.bf16.gmra.mxu0 %v1009
        %v1046 = vpop.f32.mrf.mxu0
        %v1047 = vadd.f32 %v954, %v1046
        %v1048 = vpop.f32.mrf.mxu0
        %v1049 = vadd.f32 %v956, %v1048
        %1050 = vmatmul.bf16.gmra.mxu0 %v1012
        %v1051 = vpop.f32.mrf.mxu0
        %v1052 = vadd.f32 %v959, %v1051
        %v1053 = vpop.f32.mrf.mxu0
        %v1054 = vadd.f32 %v961, %v1053
        %1055 = vmatmul.bf16.gmra.mxu0 %v1015
        %v1056 = vpop.f32.mrf.mxu0
        %v1057 = vadd.f32 %v964, %v1056
        %v1058 = vpop.f32.mrf.mxu0
        %v1059 = vadd.f32 %v966, %v1058
        %1060 = vmatmul.bf16.gmra.mxu0 %v1018
        %v1061 = vpop.f32.mrf.mxu0
        %v1062 = vadd.f32 %v969, %v1061
        %v1063 = vpop.f32.mrf.mxu0
        %v1064 = vadd.f32 %v971, %v1063
        %1065 = vmatmul.bf16.gmra.mxu0 %v1021
        %v1066 = vpop.f32.mrf.mxu0
        %v1067 = vadd.f32 %v974, %v1066
        %v1068 = vpop.f32.mrf.mxu0
        %v1069 = vadd.f32 %v976, %v1068
        %1070 = vmatmul.bf16.gmra.mxu0 %v1024
        %v1071 = vpop.f32.mrf.mxu0
        %v1072 = vadd.f32 %v979, %v1071
        %v1073 = vpop.f32.mrf.mxu0
        %v1074 = vadd.f32 %v981, %v1073
        %1075 = vmatmul.bf16.gmra.mxu0 %v1027
        %v1076 = vpop.f32.mrf.mxu0
        %v1077 = vadd.f32 %v984, %v1076
        %v1078 = vpop.f32.mrf.mxu0
        %v1079 = vadd.f32 %v986, %v1078
        %1080 = vdwg.mxu0
        %s1081 = scalar_lea.vmem %s3, 8
        %v1082 = vld [vmem:[%s1081] sm:$0xf]
        %v1083 = vpack.c.b16 %v869, %v868
        %v1084 = vpack.c.b16 %v871, %v870
        %v1085 = vpack.c.b16 %v873, %v872
        %v1086 = vpack.c.b16 %v875, %v874
        %v1087 = vpack.c.b16 %v877, %v876
        %v1088 = vpack.c.b16 %v879, %v878
        %v1089 = vpack.c.b16 %v881, %v880
        %v1090 = vpack.c.b16 %v883, %v882
        %v1092 = vsel %vm910, %v1083, 0
        %v1095 = vsel %vm910, %v1084, 0
        %v1098 = vsel %vm910, %v1085, 0
        %v1101 = vsel %vm910, %v1086, 0
        %v1104 = vsel %vm910, %v1087, 0
        %v1107 = vsel %vm910, %v1088, 0
        %v1110 = vsel %vm910, %v1089, 0
        %v1113 = vsel %vm910, %v1090, 0
        %v1116 = vsel %vm935, %v1082, 0
        %1118 = vmatpush.bf16.msra.mxu0 0
        %1119 = vmatpush.bf16.msra.mxu0 0
        %1120 = vmatpush.bf16.msra.mxu0 0
        %1121 = vmatpush.bf16.msra.mxu0 0
        %1122 = vmatpush.bf16.msra.mxu0 0
        %1123 = vmatpush.bf16.msra.mxu0 0
        %1124 = vmatpush.bf16.msra.mxu0 0
        %1125 = vmatpush.bf16.msra.mxu0 %v1116
        %1126 = vmatmul.bf16.gmra.mxu0 %v1092
        %v1127 = vpop.f32.mrf.mxu0
        %v1128 = vadd.f32 0.0, %v1127
        %v1129 = vpop.f32.mrf.mxu0
        %v1130 = vadd.f32 0.0, %v1129
        %1131 = vmatmul.bf16.gmra.mxu0 %v1095
        %v1132 = vpop.f32.mrf.mxu0
        %v1133 = vadd.f32 0.0, %v1132
        %v1134 = vpop.f32.mrf.mxu0
        %v1135 = vadd.f32 0.0, %v1134
        %1136 = vmatmul.bf16.gmra.mxu0 %v1098
        %v1137 = vpop.f32.mrf.mxu0
        %v1138 = vadd.f32 0.0, %v1137
        %v1139 = vpop.f32.mrf.mxu0
        %v1140 = vadd.f32 0.0, %v1139
        %1141 = vmatmul.bf16.gmra.mxu0 %v1101
        %v1142 = vpop.f32.mrf.mxu0
        %v1143 = vadd.f32 0.0, %v1142
        %v1144 = vpop.f32.mrf.mxu0
        %v1145 = vadd.f32 0.0, %v1144
        %1146 = vmatmul.bf16.gmra.mxu0 %v1104
        %v1147 = vpop.f32.mrf.mxu0
        %v1148 = vadd.f32 0.0, %v1147
        %v1149 = vpop.f32.mrf.mxu0
        %v1150 = vadd.f32 0.0, %v1149
        %1151 = vmatmul.bf16.gmra.mxu0 %v1107
        %v1152 = vpop.f32.mrf.mxu0
        %v1153 = vadd.f32 0.0, %v1152
        %v1154 = vpop.f32.mrf.mxu0
        %v1155 = vadd.f32 0.0, %v1154
        %1156 = vmatmul.bf16.gmra.mxu0 %v1110
        %v1157 = vpop.f32.mrf.mxu0
        %v1158 = vadd.f32 0.0, %v1157
        %v1159 = vpop.f32.mrf.mxu0
        %v1160 = vadd.f32 0.0, %v1159
        %1161 = vmatmul.bf16.gmra.mxu0 %v1113
        %v1162 = vpop.f32.mrf.mxu0
        %v1163 = vadd.f32 0.0, %v1162
        %v1164 = vpop.f32.mrf.mxu0
        %v1165 = vadd.f32 0.0, %v1164
        %1166 = vdwg.mxu0
        %v1167 = vadd.f32 %v1042, %v1128
        %v1168 = vadd.f32 %v1044, %v1130
        %v1169 = vadd.f32 %v1047, %v1133
        %v1170 = vadd.f32 %v1049, %v1135
        %v1171 = vadd.f32 %v1052, %v1138
        %v1172 = vadd.f32 %v1054, %v1140
        %v1173 = vadd.f32 %v1057, %v1143
        %v1174 = vadd.f32 %v1059, %v1145
        %v1175 = vadd.f32 %v1062, %v1148
        %v1176 = vadd.f32 %v1064, %v1150
        %v1177 = vadd.f32 %v1067, %v1153
        %v1178 = vadd.f32 %v1069, %v1155
        %v1179 = vadd.f32 %v1072, %v1158
        %v1180 = vadd.f32 %v1074, %v1160
        %v1181 = vadd.f32 %v1077, %v1163
        %v1182 = vadd.f32 %v1079, %v1165
        %v1183 = vld [vmem:[%s4] sm:$0x1]
        %v1185 = vperm.slane %v1183, 0
        %v1187 = vadd.f32 %v1167, %v1185
        %v1188 = vadd.f32 %v1168, %v1185
        %v1189 = vadd.f32 %v1169, %v1185
        %v1190 = vadd.f32 %v1170, %v1185
        %v1191 = vadd.f32 %v1171, %v1185
        %v1192 = vadd.f32 %v1172, %v1185
        %v1193 = vadd.f32 %v1173, %v1185
        %v1194 = vadd.f32 %v1174, %v1185
        %v1195 = vadd.f32 %v1175, %v1185
        %v1196 = vadd.f32 %v1176, %v1185
        %v1197 = vadd.f32 %v1177, %v1185
        %v1198 = vadd.f32 %v1178, %v1185
        %v1199 = vadd.f32 %v1179, %v1185
        %v1200 = vadd.f32 %v1180, %v1185
        %v1201 = vadd.f32 %v1181, %v1185
        %v1202 = vadd.f32 %v1182, %v1185
        %vm1203 = vcmp.gt.f32.partialorder %v1187, 0.0
        %vm1204 = vcmp.gt.f32.partialorder %v1188, 0.0
        %vm1205 = vcmp.gt.f32.partialorder %v1189, 0.0
        %vm1206 = vcmp.gt.f32.partialorder %v1190, 0.0
        %vm1207 = vcmp.gt.f32.partialorder %v1191, 0.0
        %vm1208 = vcmp.gt.f32.partialorder %v1192, 0.0
        %vm1209 = vcmp.gt.f32.partialorder %v1193, 0.0
        %vm1210 = vcmp.gt.f32.partialorder %v1194, 0.0
        %vm1211 = vcmp.gt.f32.partialorder %v1195, 0.0
        %vm1212 = vcmp.gt.f32.partialorder %v1196, 0.0
        %vm1213 = vcmp.gt.f32.partialorder %v1197, 0.0
        %vm1214 = vcmp.gt.f32.partialorder %v1198, 0.0
        %vm1215 = vcmp.gt.f32.partialorder %v1199, 0.0
        %vm1216 = vcmp.gt.f32.partialorder %v1200, 0.0
        %vm1217 = vcmp.gt.f32.partialorder %v1201, 0.0
        %vm1218 = vcmp.gt.f32.partialorder %v1202, 0.0
        %v1219 = vmul.f32 %v1187, 0.01
        %v1220 = vmul.f32 %v1188, 0.01
        %v1221 = vmul.f32 %v1189, 0.01
        %v1222 = vmul.f32 %v1190, 0.01
        %v1223 = vmul.f32 %v1191, 0.01
        %v1224 = vmul.f32 %v1192, 0.01
        %v1225 = vmul.f32 %v1193, 0.01
        %v1226 = vmul.f32 %v1194, 0.01
        %v1227 = vmul.f32 %v1195, 0.01
        %v1228 = vmul.f32 %v1196, 0.01
        %v1229 = vmul.f32 %v1197, 0.01
        %v1230 = vmul.f32 %v1198, 0.01
        %v1231 = vmul.f32 %v1199, 0.01
        %v1232 = vmul.f32 %v1200, 0.01
        %v1233 = vmul.f32 %v1201, 0.01
        %v1234 = vmul.f32 %v1202, 0.01
        %v1235 = vsel %vm1203, %v1187, %v1219
        %v1236 = vsel %vm1204, %v1188, %v1220
        %v1237 = vsel %vm1205, %v1189, %v1221
        %v1238 = vsel %vm1206, %v1190, %v1222
        %v1239 = vsel %vm1207, %v1191, %v1223
        %v1240 = vsel %vm1208, %v1192, %v1224
        %v1241 = vsel %vm1209, %v1193, %v1225
        %v1242 = vsel %vm1210, %v1194, %v1226
        %v1243 = vsel %vm1211, %v1195, %v1227
        %v1244 = vsel %vm1212, %v1196, %v1228
        %v1245 = vsel %vm1213, %v1197, %v1229
        %v1246 = vsel %vm1214, %v1198, %v1230
        %v1247 = vsel %vm1215, %v1199, %v1231
        %v1248 = vsel %vm1216, %v1200, %v1232
        %v1249 = vsel %vm1217, %v1201, %v1233
        %v1250 = vsel %vm1218, %v1202, %v1234
        %v1251 = vld [vmem:[%s5] sm:$0x3]
        %v1252 = vld [vmem:[%s6] sm:$0x1]
        %v1254 = vperm.slane %v1252, 0
        %v1257 = vsel %vm390, %v364, 0
        %v1260 = vsel %vm390, %v365, 0
        %v1263 = vsel %vm390, %v366, 0
        %v1266 = vsel %vm390, %v367, 0
        %v1269 = vsel %vm390, %v368, 0
        %v1272 = vsel %vm390, %v369, 0
        %v1275 = vsel %vm390, %v370, 0
        %v1278 = vsel %vm390, %v371, 0
        %v1281 = vsel %vm418, %v1251, 0
        %1283 = vmatpush.bf16.msra.mxu0 0
        %1284 = vmatpush.bf16.msra.mxu0 0
        %1285 = vmatpush.bf16.msra.mxu0 0
        %1286 = vmatpush.bf16.msra.mxu0 0
        %1287 = vmatpush.bf16.msra.mxu0 0
        %1288 = vmatpush.bf16.msra.mxu0 0
        %1289 = vmatpush.bf16.msra.mxu0 0
        %1290 = vmatpush.bf16.msra.mxu0 %v1281
        %1291 = vmatmul.bf16.gmra.mxu0 %v1257
        %v1292 = vpop.f32.mrf.mxu0
        %v1293 = vadd.f32 %v1254, %v1292
        %v1294 = vpop.f32.mrf.mxu0
        %v1295 = vadd.f32 %v1254, %v1294
        %1296 = vmatmul.bf16.gmra.mxu0 %v1260
        %v1297 = vpop.f32.mrf.mxu0
        %v1298 = vadd.f32 %v1254, %v1297
        %v1299 = vpop.f32.mrf.mxu0
        %v1300 = vadd.f32 %v1254, %v1299
        %1301 = vmatmul.bf16.gmra.mxu0 %v1263
        %v1302 = vpop.f32.mrf.mxu0
        %v1303 = vadd.f32 %v1254, %v1302
        %v1304 = vpop.f32.mrf.mxu0
        %v1305 = vadd.f32 %v1254, %v1304
        %1306 = vmatmul.bf16.gmra.mxu0 %v1266
        %v1307 = vpop.f32.mrf.mxu0
        %v1308 = vadd.f32 %v1254, %v1307
        %v1309 = vpop.f32.mrf.mxu0
        %v1310 = vadd.f32 %v1254, %v1309
        %1311 = vmatmul.bf16.gmra.mxu0 %v1269
        %v1312 = vpop.f32.mrf.mxu0
        %v1313 = vadd.f32 %v1254, %v1312
        %v1314 = vpop.f32.mrf.mxu0
        %v1315 = vadd.f32 %v1254, %v1314
        %1316 = vmatmul.bf16.gmra.mxu0 %v1272
        %v1317 = vpop.f32.mrf.mxu0
        %v1318 = vadd.f32 %v1254, %v1317
        %v1319 = vpop.f32.mrf.mxu0
        %v1320 = vadd.f32 %v1254, %v1319
        %1321 = vmatmul.bf16.gmra.mxu0 %v1275
        %v1322 = vpop.f32.mrf.mxu0
        %v1323 = vadd.f32 %v1254, %v1322
        %v1324 = vpop.f32.mrf.mxu0
        %v1325 = vadd.f32 %v1254, %v1324
        %1326 = vmatmul.bf16.gmra.mxu0 %v1278
        %v1327 = vpop.f32.mrf.mxu0
        %v1328 = vadd.f32 %v1254, %v1327
        %v1329 = vpop.f32.mrf.mxu0
        %v1330 = vadd.f32 %v1254, %v1329
        %1331 = vdwg.mxu0
        %v1332 = vadd.f32 %v1235, %v1293
        %v1333 = vadd.f32 %v1236, %v1295
        %v1334 = vadd.f32 %v1237, %v1298
        %v1335 = vadd.f32 %v1238, %v1300
        %v1336 = vadd.f32 %v1239, %v1303
        %v1337 = vadd.f32 %v1240, %v1305
        %v1338 = vadd.f32 %v1241, %v1308
        %v1339 = vadd.f32 %v1242, %v1310
        %v1340 = vadd.f32 %v1243, %v1313
        %v1341 = vadd.f32 %v1244, %v1315
        %v1342 = vadd.f32 %v1245, %v1318
        %v1343 = vadd.f32 %v1246, %v1320
        %v1344 = vadd.f32 %v1247, %v1323
        %v1345 = vadd.f32 %v1248, %v1325
        %v1346 = vadd.f32 %v1249, %v1328
        %v1347 = vadd.f32 %v1250, %v1330
        %vm1348 = vcmp.gt.f32.partialorder %v1332, 0.0
        %vm1349 = vcmp.gt.f32.partialorder %v1333, 0.0
        %vm1350 = vcmp.gt.f32.partialorder %v1334, 0.0
        %vm1351 = vcmp.gt.f32.partialorder %v1335, 0.0
        %vm1352 = vcmp.gt.f32.partialorder %v1336, 0.0
        %vm1353 = vcmp.gt.f32.partialorder %v1337, 0.0
        %vm1354 = vcmp.gt.f32.partialorder %v1338, 0.0
        %vm1355 = vcmp.gt.f32.partialorder %v1339, 0.0
        %vm1356 = vcmp.gt.f32.partialorder %v1340, 0.0
        %vm1357 = vcmp.gt.f32.partialorder %v1341, 0.0
        %vm1358 = vcmp.gt.f32.partialorder %v1342, 0.0
        %vm1359 = vcmp.gt.f32.partialorder %v1343, 0.0
        %vm1360 = vcmp.gt.f32.partialorder %v1344, 0.0
        %vm1361 = vcmp.gt.f32.partialorder %v1345, 0.0
        %vm1362 = vcmp.gt.f32.partialorder %v1346, 0.0
        %vm1363 = vcmp.gt.f32.partialorder %v1347, 0.0
        %v1364 = vmul.f32 %v1332, 0.01
        %v1365 = vmul.f32 %v1333, 0.01
        %v1366 = vmul.f32 %v1334, 0.01
        %v1367 = vmul.f32 %v1335, 0.01
        %v1368 = vmul.f32 %v1336, 0.01
        %v1369 = vmul.f32 %v1337, 0.01
        %v1370 = vmul.f32 %v1338, 0.01
        %v1371 = vmul.f32 %v1339, 0.01
        %v1372 = vmul.f32 %v1340, 0.01
        %v1373 = vmul.f32 %v1341, 0.01
        %v1374 = vmul.f32 %v1342, 0.01
        %v1375 = vmul.f32 %v1343, 0.01
        %v1376 = vmul.f32 %v1344, 0.01
        %v1377 = vmul.f32 %v1345, 0.01
        %v1378 = vmul.f32 %v1346, 0.01
        %v1379 = vmul.f32 %v1347, 0.01
        %v1380 = vsel %vm1348, %v1332, %v1364
        %v1381 = vsel %vm1349, %v1333, %v1365
        %v1382 = vsel %vm1350, %v1334, %v1366
        %v1383 = vsel %vm1351, %v1335, %v1367
        %v1384 = vsel %vm1352, %v1336, %v1368
        %v1385 = vsel %vm1353, %v1337, %v1369
        %v1386 = vsel %vm1354, %v1338, %v1370
        %v1387 = vsel %vm1355, %v1339, %v1371
        %v1388 = vsel %vm1356, %v1340, %v1372
        %v1389 = vsel %vm1357, %v1341, %v1373
        %v1390 = vsel %vm1358, %v1342, %v1374
        %v1391 = vsel %vm1359, %v1343, %v1375
        %v1392 = vsel %vm1360, %v1344, %v1376
        %v1393 = vsel %vm1361, %v1345, %v1377
        %v1394 = vsel %vm1362, %v1346, %v1378
        %v1395 = vsel %vm1363, %v1347, %v1379
        %1396 = vxpose.xlu0.b32.start [1/16] %v1380, 128
        %1397 = vxpose.xlu0.b32.cont [2/16] %v1381, 128
        %1398 = vxpose.xlu0.b32.cont [3/16] %v1382, 128
        %1399 = vxpose.xlu0.b32.cont [4/16] %v1383, 128
        %1400 = vxpose.xlu0.b32.cont [5/16] %v1384, 128
        %1401 = vxpose.xlu0.b32.cont [6/16] %v1385, 128
        %1402 = vxpose.xlu0.b32.cont [7/16] %v1386, 128
        %1403 = vxpose.xlu0.b32.cont [8/16] %v1387, 128
        %1404 = vxpose.xlu0.b32.cont [9/16] %v1388, 128
        %1405 = vxpose.xlu0.b32.cont [10/16] %v1389, 128
        %1406 = vxpose.xlu0.b32.cont [11/16] %v1390, 128
        %1407 = vxpose.xlu0.b32.cont [12/16] %v1391, 128
        %1408 = vxpose.xlu0.b32.cont [13/16] %v1392, 128
        %1409 = vxpose.xlu0.b32.cont [14/16] %v1393, 128
        %1410 = vxpose.xlu0.b32.cont [15/16] %v1394, 128
        %1411 = vxpose.xlu0.b32.end [16/16] %v1395, 128
        %v1412 = vpop.trf.xlu0
        %v1413 = vpop.trf.xlu0
        %v1414 = vpop.trf.xlu0
        %v1415 = vpop.trf.xlu0
        %v1416 = vpop.trf.xlu0
        %v1417 = vpop.trf.xlu0
        %v1418 = vpop.trf.xlu0
        %v1419 = vpop.trf.xlu0
        %v1420 = vpop.trf.xlu0
        %v1421 = vpop.trf.xlu0
        %v1422 = vpop.trf.xlu0
        %v1423 = vpop.trf.xlu0
        %v1424 = vpop.trf.xlu0
        %v1425 = vpop.trf.xlu0
        %v1426 = vpop.trf.xlu0
        %v1427 = vpop.trf.xlu0
        %1428 = vst [vmem:[%s295] sm:$0xff] %v1412
        %s1429 = sand.u32 %s197, 1
        %s1430 = scalar_lea.sflag [#allocation3], %s1429
        %s1431 = sand.u32 %s197, 1
        %s1432 = smul.addr %s1431, 8
        %s1433 = scalar_lea.vmem [#allocation2], %s1432
        // Predicated region
        $region49: #{tpu_custom_call.1} parent=47 // pred_check
          %p1434 = pneg %p207
        $region50: #{tpu_custom_call.1} parent=47 // pred_check_branch
          %1436 = sbr.rel (%p1434) target = $region52
        $region51: #{tpu_custom_call.1} parent=47 // pred_region
          %1438 = vsyncadd %s1430, 0
          %s1439 = sadd.s32 %s26, %s25
          %s1440 = smul.addr %s1439, 8
          %s1441 = scalar_lea.hbm %s7, %s1440
          %s1443 = sshll.u32 %s1433, 4
          %s1444 = int_to_ptr.vmem [resolvable:$true] %s1443
          %s1445 = sshll.u32 %s1441, 4
          %s1446 = int_to_ptr.hbm [resolvable:$true] %s1445
          %1448 = dma.vmem_to_hbm [thread:$0]  %s1444, 128, %s1446, %s1430
        $region52: #{tpu_custom_call.1} parent=47 // pred_fallthru
          _
      $region48: #{tpu_custom_call.1} parent=5 // pred_fallthru
        _
      %p1449 = scmp.le.s32.totalorder 2, %s16
      // Predicated region
      $region53: #{tpu_custom_call.1} parent=5 // pred_check
        %p1450 = pneg %p1449
      $region54: #{tpu_custom_call.1} parent=5 // pred_check_branch
        %1452 = sbr.rel (%p1450) target = $region56
      $region55: #{tpu_custom_call.1} parent=5 // pred_region
        %s1453 = ssub.s32 %s16, 2
        // Predicated region
        $region57: #{tpu_custom_call.1} parent=55 // pred_check
          %p1454 = pneg %p213
        $region58: #{tpu_custom_call.1} parent=55 // pred_check_branch
          %1456 = sbr.rel (%p1454) target = $region60
        $region59: #{tpu_custom_call.1} parent=55 // pred_region
          %s1457 = sand.u32 %s198, 1
          %s1458 = scalar_lea.sflag [#allocation3], %s1457
          %s1459 = sand.u32 %s198, 1
          %s1460 = smul.addr %s1459, 8
          %s1461 = scalar_lea.vmem [#allocation2], %s1460
          %1463 = dma.done %s1458, 128
        $region60: #{tpu_custom_call.1} parent=55 // pred_fallthru
          _
      $region56: #{tpu_custom_call.1} parent=5 // pred_fallthru
        _
    $region6: #{tpu_custom_call.1} parent=1 // loop_footer
      %s20 = sadd.s32 1, %s16
    $region7: #{tpu_custom_call.1} parent=1 // loop_footer_branch
      %15 = sbr.rel target = $region3
    $region8: #{tpu_custom_call.1} parent=1 // loop_exit
      _
    %1464 = vsyncpa [#allocation3], 1
    %s1465 = scalar_lea.sflag [#allocation3], 1
    %1466 = vsyncpa %s1465, 1

</llo_original>
